<compile_context>
chip_gen: v5e
topology: v5e:2x2
jax: 0.10.0
libtpu: 0.0.40
codegen_flags: <defaults>
</compile_context>

<pallas_src>
import jax
import jax.numpy as jnp
from jax.experimental import pallas as pl
from jax.experimental.pallas import tpu as pltpu

FEAT_DIM = 2048          # resnet50 final channel count
HIDDEN_DIM = 256         # self.classifier out_features
NUM_ATT = 30             # self.num_att
NUM_ATT_PADDED = 128     # lane-dense padded output width (sliced back to 30)

_FEAT_BLOCK_BUDGET = 12 << 20   # per-buffer bf16 feature-block budget (bytes)


# ----------------------------- Pallas kernel ------------------------------ #
def _attribute_head_kernel(feat_ref, w1_ref, b1_ref, w2_ref, b2_ref,
                           inter_ref, out_ref):
    """Fused global-avg-pool + Linear(2048->256) + Linear(256->128 padded)."""
    feat = feat_ref[...]                                    # (TB, HW, C)  bf16
    hw = feat.shape[1]
    # F.avg_pool2d(x, x.shape[2:]) == mean over all spatial positions.
    # Accumulate the pooling sum in f32 even though the DMA'd features are bf16.
    pooled = jnp.sum(feat.astype(jnp.float32), axis=1) * (1.0 / hw)   # (TB, C)

    # classifier: Linear(2048, 256) -- bf16 MXU operands, f32 accumulate.
    x_inter = jnp.dot(pooled.astype(jnp.bfloat16), w1_ref[...],
                      preferred_element_type=jnp.float32) + b1_ref[...]
    inter_ref[...] = x_inter.astype(inter_ref.dtype)        # (TB, 256) f32

    # classifier_2: Linear(256, 30) -- weight zero-padded to 128 cols so the
    # output store is lane-dense / unmasked.
    logits = jnp.dot(x_inter.astype(jnp.bfloat16), w2_ref[...],
                     preferred_element_type=jnp.float32) + b2_ref[...]
    out_ref[...] = logits.astype(out_ref.dtype)             # (TB, 128) f32


def _pick_batch_tile(batch, hw):
    """Largest batch tile whose bf16 feature block fits the per-buffer budget."""
    tb = max(1, _FEAT_BLOCK_BUDGET // (hw * FEAT_DIM * 2))
    if tb >= batch:
        return batch                      # single block covers the whole batch
    if batch >= 8:
        return max(8, (min(tb, batch) // 8) * 8)   # multiple of 8 for out blocks
    return batch


def _vmem_limit_bytes(tb, hw):
    feat_block = tb * hw * FEAT_DIM * 2                                 # bf16
    weights = ((FEAT_DIM * HIDDEN_DIM + HIDDEN_DIM * NUM_ATT_PADDED) * 2
               + (HIDDEN_DIM + NUM_ATT_PADDED) * 4)
    outs = tb * (HIDDEN_DIM + NUM_ATT_PADDED) * 4
    # Conservative: assume double buffering everywhere, plus 2 MiB slack.
    total = 2 * feat_block + 2 * weights + 2 * outs + (2 << 20)
    return int(min(max(total, 16 << 20), 32 << 20))


def attribute_head(feat_bhwc, w1, b1, w2, b2):
    """feat_bhwc: (B, HW, C) bf16; w*/b*: pre-transformed params (make_params)."""
    B, HW, C = feat_bhwc.shape
    TB = _pick_batch_tile(B, HW)
    grid = (pl.cdiv(B, TB),)

    # Weight/bias blocks never change across the batch grid -> single buffer.
    const_mode = pl.Buffered(1)

    return pl.pallas_call(
        _attribute_head_kernel,
        out_shape=(
            jax.ShapeDtypeStruct((B, HIDDEN_DIM), jnp.float32),      # x_intermediate
            jax.ShapeDtypeStruct((B, NUM_ATT_PADDED), jnp.float32),  # padded logits
        ),
        grid=grid,
        in_specs=[
            pl.BlockSpec((TB, HW, C), lambda i: (i, 0, 0)),
            pl.BlockSpec((C, HIDDEN_DIM), lambda i: (0, 0),
                         pipeline_mode=const_mode),
            pl.BlockSpec((1, HIDDEN_DIM), lambda i: (0, 0),
                         pipeline_mode=const_mode),
            pl.BlockSpec((HIDDEN_DIM, NUM_ATT_PADDED), lambda i: (0, 0),
                         pipeline_mode=const_mode),
            pl.BlockSpec((1, NUM_ATT_PADDED), lambda i: (0, 0),
                         pipeline_mode=const_mode),
        ],
        out_specs=(
            pl.BlockSpec((TB, HIDDEN_DIM), lambda i: (i, 0)),
            pl.BlockSpec((TB, NUM_ATT_PADDED), lambda i: (i, 0)),
        ),
        compiler_params=pltpu.CompilerParams(
            dimension_semantics=("parallel",),
            vmem_limit_bytes=_vmem_limit_bytes(TB, HW)),
    )(feat_bhwc, w1, b1, w2, b2)


# ------------------------------- JAX glue --------------------------------- #
def make_params(key):
    """Build parameters once, already in kernel layout (in, out), bf16, padded."""
    k1, k2, k3 = jax.random.split(key, 3)
    # classifier: init.normal(weight, std=0.001), init.constant(bias, 0)
    w1_torch = 0.001 * jax.random.normal(k1, (HIDDEN_DIM, FEAT_DIM), jnp.float32)
    b1_torch = jnp.zeros((HIDDEN_DIM,), jnp.float32)
    # classifier_2: PyTorch default Linear init (uniform +/- 1/sqrt(fan_in))
    bound = 1.0 / jnp.sqrt(float(HIDDEN_DIM))
    w2_torch = jax.random.uniform(k2, (NUM_ATT, HIDDEN_DIM), jnp.float32,
                                  minval=-bound, maxval=bound)
    b2_torch = jax.random.uniform(k3, (NUM_ATT,), jnp.float32,
                                  minval=-bound, maxval=bound)

    # One-time layout transforms: (out,in) -> (in,out), bf16 MXU operands,
    # zero-pad classifier_2 to 128 output lanes.
    w1 = jnp.transpose(w1_torch).astype(jnp.bfloat16)                 # (2048, 256)
    b1 = b1_torch.reshape(1, HIDDEN_DIM)                              # (1, 256) f32
    w2_pad = jnp.zeros((HIDDEN_DIM, NUM_ATT_PADDED), jnp.float32)
    w2_pad = w2_pad.at[:, :NUM_ATT].set(jnp.transpose(w2_torch))
    w2 = w2_pad.astype(jnp.bfloat16)                                  # (256, 128)
    b2 = jnp.zeros((1, NUM_ATT_PADDED), jnp.float32).at[0, :NUM_ATT].set(b2_torch)
    return {"w1": w1, "b1": b1, "w2": w2, "b2": b2}


def attribute_forward(params, base_feat_nhwc):
    """base_feat_nhwc: (B, H, W, 2048) feature map from the resnet50 base,
    in TPU-native NHWC (ideally already bf16).  No relayout is performed:
    the NHWC->(B,HW,C) reshape is a free view."""
    B, H, W, C = base_feat_nhwc.shape
    feat = base_feat_nhwc.reshape(B, H * W, C)
    if feat.dtype != jnp.bfloat16:
        feat = feat.astype(jnp.bfloat16)   # no-op if backbone already emits bf16
    x_inter, logits_pad = attribute_head(feat, params["w1"], params["b1"],
                                         params["w2"], params["b2"])
    logits = logits_pad[:, :NUM_ATT]       # slice away the zero padding
    return logits, x_inter                 # matches (x, x_intermediate)


# --------------------------------- main ------------------------------------ #
if __name__ == "__main__":
    key = jax.random.PRNGKey(0)
    kp, kf = jax.random.split(key)
    params = make_params(kp)

    # Small, deterministic stand-in for the resnet50 backbone output, already
    # in TPU-native NHWC bf16: batch=2, spatial 4x4, channels=2048.
    B, H, W = 2, 4, 4
    base_feat = jax.random.normal(kf, (B, H, W, FEAT_DIM), jnp.bfloat16)

    logits, x_inter = jax.jit(attribute_forward)(params, base_feat)
    logits = jax.block_until_ready(logits)
    x_inter = jax.block_until_ready(x_inter)

    assert logits.shape == (B, NUM_ATT), logits.shape
    assert x_inter.shape == (B, HIDDEN_DIM), x_inter.shape
    assert bool(jnp.all(jnp.isfinite(logits)))
    assert bool(jnp.all(jnp.isfinite(x_inter)))
    print("KERNEL_OK")
</pallas_src>

<mosaic_0001>
module attributes {stable_mosaic.version = 11 : i64} {
  func.func @_attribute_head_kernel(%arg0: i32, %arg1: memref<2x16x2048xbf16, #tpu.memory_space<vmem>>, %arg2: memref<2048x256xbf16, #tpu.memory_space<vmem>>, %arg3: memref<1x256xf32, #tpu.memory_space<vmem>>, %arg4: memref<256x128xbf16, #tpu.memory_space<vmem>>, %arg5: memref<1x128xf32, #tpu.memory_space<vmem>>, %arg6: memref<2x256xf32, #tpu.memory_space<vmem>>, %arg7: memref<2x128xf32, #tpu.memory_space<vmem>>) attributes {dimension_semantics = [#tpu.dimension_semantics<parallel>], iteration_bounds = array<i64: 1>, scalar_prefetch = 0 : i64, scratch_operands = 0 : i64, tpu.core_type = #tpu.core_type<tc>, window_params = [{transform_indices = @transform_0, window_bounds = array<i64: 2, 16, 2048>}, {pipeline_mode = #tpu.pipeline_mode<synchronous>, transform_indices = @transform_1, window_bounds = array<i64: 2048, 256>}, {pipeline_mode = #tpu.pipeline_mode<synchronous>, transform_indices = @transform_2, window_bounds = array<i64: 1, 256>}, {pipeline_mode = #tpu.pipeline_mode<synchronous>, transform_indices = @transform_3, window_bounds = array<i64: 256, 128>}, {pipeline_mode = #tpu.pipeline_mode<synchronous>, transform_indices = @transform_4, window_bounds = array<i64: 1, 128>}, {transform_indices = @transform_5, window_bounds = array<i64: 2, 256>}, {transform_indices = @transform_6, window_bounds = array<i64: 2, 128>}]} {
    %c0 = arith.constant 0 : index
    %c0_0 = arith.constant 0 : index
    %c0_1 = arith.constant 0 : index
    %0 = vector.load %arg1[%c0, %c0_0, %c0_1] : memref<2x16x2048xbf16, #tpu.memory_space<vmem>>, vector<2x16x2048xbf16>
    %1 = arith.extf %0 : vector<2x16x2048xbf16> to vector<2x16x2048xf32>
    %cst = arith.constant dense<0.000000e+00> : vector<2x2048xf32>
    %2 = vector.multi_reduction <add>, %1, %cst [1] : vector<2x16x2048xf32> to vector<2x2048xf32>
    %cst_2 = arith.constant 6.250000e-02 : f32
    %3 = vector.broadcast %cst_2 : f32 to vector<2x2048xf32>
    %4 = arith.mulf %2, %3 : vector<2x2048xf32>
    %5 = arith.truncf %4 : vector<2x2048xf32> to vector<2x2048xbf16>
    %c0_3 = arith.constant 0 : index
    %c0_4 = arith.constant 0 : index
    %6 = vector.load %arg2[%c0_3, %c0_4] : memref<2048x256xbf16, #tpu.memory_space<vmem>>, vector<2048x256xbf16>
    %cst_5 = arith.constant dense<0.000000e+00> : vector<2x256xf32>
    %7 = tpu.matmul %5, %6, %cst_5 {dimension_numbers = #tpu.dot_dimension_numbers<[1], [0], [0], [1], [0, 0, 1, 1], [], []>} : vector<2x2048xbf16>, vector<2048x256xbf16>, vector<2x256xf32> -> vector<2x256xf32>
    %c0_6 = arith.constant 0 : index
    %c0_7 = arith.constant 0 : index
    %8 = vector.load %arg3[%c0_6, %c0_7] : memref<1x256xf32, #tpu.memory_space<vmem>>, vector<1x256xf32>
    %9 = vector.broadcast %8 : vector<1x256xf32> to vector<2x256xf32>
    %10 = arith.addf %7, %9 : vector<2x256xf32>
    %c0_8 = arith.constant 0 : index
    %c0_9 = arith.constant 0 : index
    %11 = vector.load %arg6[%c0_8, %c0_9] : memref<2x256xf32, #tpu.memory_space<vmem>>, vector<2x256xf32>
    tpu.vector_store %arg6[%c0_8, %c0_9], %10 {strides = array<i32>} : memref<2x256xf32, #tpu.memory_space<vmem>>, vector<2x256xf32>,
    %12 = arith.truncf %10 : vector<2x256xf32> to vector<2x256xbf16>
    %c0_10 = arith.constant 0 : index
    %c0_11 = arith.constant 0 : index
    %13 = vector.load %arg4[%c0_10, %c0_11] : memref<256x128xbf16, #tpu.memory_space<vmem>>, vector<256x128xbf16>
    %cst_12 = arith.constant dense<0.000000e+00> : vector<2x128xf32>
    %14 = tpu.matmul %12, %13, %cst_12 {dimension_numbers = #tpu.dot_dimension_numbers<[1], [0], [0], [1], [0, 0, 1, 1], [], []>} : vector<2x256xbf16>, vector<256x128xbf16>, vector<2x128xf32> -> vector<2x128xf32>
    %c0_13 = arith.constant 0 : index
    %c0_14 = arith.constant 0 : index
    %15 = vector.load %arg5[%c0_13, %c0_14] : memref<1x128xf32, #tpu.memory_space<vmem>>, vector<1x128xf32>
    %16 = vector.broadcast %15 : vector<1x128xf32> to vector<2x128xf32>
    %17 = arith.addf %14, %16 : vector<2x128xf32>
    %c0_15 = arith.constant 0 : index
    %c0_16 = arith.constant 0 : index
    %18 = vector.load %arg7[%c0_15, %c0_16] : memref<2x128xf32, #tpu.memory_space<vmem>>, vector<2x128xf32>
    tpu.vector_store %arg7[%c0_15, %c0_16], %17 {strides = array<i32>} : memref<2x128xf32, #tpu.memory_space<vmem>>, vector<2x128xf32>,
    return
  }
  func.func @transform_0(%arg0: i32) -> (i32, i32, i32) {
    %c0_i32 = arith.constant 0 : i32
    %c0_i32_0 = arith.constant 0 : i32
    %c0_i32_1 = arith.constant 0 : i32
    return %arg0, %c0_i32, %c0_i32_0 : i32, i32, i32
  }
  func.func @transform_1(%arg0: i32) -> (i32, i32) {
    %c0_i32 = arith.constant 0 : i32
    %c0_i32_0 = arith.constant 0 : i32
    %c0_i32_1 = arith.constant 0 : i32
    return %c0_i32, %c0_i32_0 : i32, i32
  }
  func.func @transform_2(%arg0: i32) -> (i32, i32) {
    %c0_i32 = arith.constant 0 : i32
    %c0_i32_0 = arith.constant 0 : i32
    %c0_i32_1 = arith.constant 0 : i32
    return %c0_i32, %c0_i32_0 : i32, i32
  }
  func.func @transform_3(%arg0: i32) -> (i32, i32) {
    %c0_i32 = arith.constant 0 : i32
    %c0_i32_0 = arith.constant 0 : i32
    %c0_i32_1 = arith.constant 0 : i32
    return %c0_i32, %c0_i32_0 : i32, i32
  }
  func.func @transform_4(%arg0: i32) -> (i32, i32) {
    %c0_i32 = arith.constant 0 : i32
    %c0_i32_0 = arith.constant 0 : i32
    %c0_i32_1 = arith.constant 0 : i32
    return %c0_i32, %c0_i32_0 : i32, i32
  }
  func.func @transform_5(%arg0: i32) -> (i32, i32) {
    %c0_i32 = arith.constant 0 : i32
    %c0_i32_0 = arith.constant 0 : i32
    return %arg0, %c0_i32 : i32, i32
  }
  func.func @transform_6(%arg0: i32) -> (i32, i32) {
    %c0_i32 = arith.constant 0 : i32
    %c0_i32_0 = arith.constant 0 : i32
    return %arg0, %c0_i32 : i32, i32
  }
}

</mosaic_0001>

<llo_original>
// kernel: attribute_forward.1
$region0: #{attribute_forward.1}
  #allocation0 [shape = 'u32[]', space=smem, size = 0x4, offset = 0x4, fixed_abs, tag = 'smem constant byte address 0x4 - core index']
  #allocation1 [shape = 'u32[72,128]{1,0:T(1,128)}', space=vmem, size = 0x9000, scoped, tag = 'internal scratch']
  %s0 = inlined_call_operand.vmem [shape: bf16[2,16,2048], index: 0, kind: input, shape index: {}]
  %s1 = inlined_call_operand.hbm [shape: bf16[2048,256], index: 1, kind: input, shape index: {}]
  %s2 = inlined_call_operand.vmem [shape: f32[1,256], index: 2, kind: input, shape index: {}]
  %s3 = inlined_call_operand.vmem [shape: bf16[256,128], index: 3, kind: input, shape index: {}]
  %s4 = inlined_call_operand.vmem [shape: f32[1,128], index: 4, kind: input, shape index: {}]
  %s5 = inlined_call_operand.hbm [shape: f32[2,256], index: 5, kind: output, shape index: {0}]
  %s6 = inlined_call_operand.hbm [shape: f32[2,128], index: 6, kind: output, shape index: {1}]
  %7 = xla_tuple %s5, %s6
  %s8 = sld [smem:[#allocation0]]
  $region42: #{attribute_forward.1} parent=0
    _
  %s10 = ssub.s32 1, %s8
  %s11 = scalar_select 0, %s10, %s8
  $region1: #{attribute_forward.1} parent=0
    #allocation2 [shape = 'u8[1048576]{0}', space=vmem, size = 0x100000, scoped, tag = 'input window, operand 1, single buffered']
    #allocation3 [shape = 's32[1]{0}', space=sflag, size = 0x4, scoped, tag = 'scoped memory for attribute_forward.1']
    #allocation4 [shape = 's32[1]{0}', space=sflag, size = 0x4, scoped, tag = 'scoped memory for attribute_forward.1']
    #allocation5 [shape = 'u8[2048]{0}', space=vmem, size = 0x800, scoped, tag = 'output window, operand 0, single buffered']
    #allocation6 [shape = 'u8[1024]{0}', space=vmem, size = 0x400, scoped, tag = 'output window, operand 1, single buffered']
    #allocation7 [shape = 's32[1]{0}', space=sflag, size = 0x4, scoped, tag = 'scoped memory for attribute_forward.1']
    %12 = vsyncpa [#allocation3], 0
    %13 = vsyncpa [#allocation4], 0
    %14 = vsyncpa [#allocation7], 0
    // Predicated region
    $region2: #{attribute_forward.1} parent=1 // pred_check
      _
    $region3: #{attribute_forward.1} parent=1 // pred_check_branch
      %16 = sbr.rel (0) target = $region5
    $region4: #{attribute_forward.1} parent=1 // pred_region
      _
    $region5: #{attribute_forward.1} parent=1 // pred_fallthru
      _
    // Predicated region
    $region6: #{attribute_forward.1} parent=1 // pred_check
      _
    $region7: #{attribute_forward.1} parent=1 // pred_check_branch
      %18 = sbr.rel (0) target = $region9
    $region8: #{attribute_forward.1} parent=1 // pred_region
      %20 = vsyncadd [#allocation3], 0
      %s21 = sshll.u32 %s1, 4
      %s22 = int_to_ptr.hbm [resolvable:$true] %s21
      %s23 = sshll.u32 [#allocation2], 4
      %s24 = int_to_ptr.vmem [resolvable:$true] %s23
      %29 = dma.hbm_to_vmem [thread:$0]  %s22, 32768, %s24, [#allocation3], 128, 128, 8
    $region9: #{attribute_forward.1} parent=1 // pred_fallthru
      _
    // Predicated region
    $region10: #{attribute_forward.1} parent=1 // pred_check
      _
    $region11: #{attribute_forward.1} parent=1 // pred_check_branch
      %31 = sbr.rel (0) target = $region13
    $region12: #{attribute_forward.1} parent=1 // pred_region
      _
    $region13: #{attribute_forward.1} parent=1 // pred_fallthru
      _
    // Predicated region
    $region14: #{attribute_forward.1} parent=1 // pred_check
      _
    $region15: #{attribute_forward.1} parent=1 // pred_check_branch
      %33 = sbr.rel (0) target = $region17
    $region16: #{attribute_forward.1} parent=1 // pred_region
      _
    $region17: #{attribute_forward.1} parent=1 // pred_fallthru
      _
    // Predicated region
    $region18: #{attribute_forward.1} parent=1 // pred_check
      _
    $region19: #{attribute_forward.1} parent=1 // pred_check_branch
      %35 = sbr.rel (0) target = $region21
    $region20: #{attribute_forward.1} parent=1 // pred_region
      _
    $region21: #{attribute_forward.1} parent=1 // pred_fallthru
      _
    // Predicated region
    $region22: #{attribute_forward.1} parent=1 // pred_check
      _
    $region23: #{attribute_forward.1} parent=1 // pred_check_branch
      %37 = sbr.rel (0) target = $region25
    $region24: #{attribute_forward.1} parent=1 // pred_region
      %39 = dma.done [#allocation3], 32768
    $region25: #{attribute_forward.1} parent=1 // pred_fallthru
      _
    %v40 = vld [vmem:[%s0] sm:$0xff]
    %v41 = vld [vmem:[%s0 + $0x8] sm:$0xff]
    %v42 = vld [vmem:[%s0 + $0x10] sm:$0xff]
    %v43 = vld [vmem:[%s0 + $0x18] sm:$0xff]
    %v44 = vld [vmem:[%s0 + $0x20] sm:$0xff]
    %v45 = vld [vmem:[%s0 + $0x28] sm:$0xff]
    %v46 = vld [vmem:[%s0 + $0x30] sm:$0xff]
    %v47 = vld [vmem:[%s0 + $0x38] sm:$0xff]
    %v48 = vld [vmem:[%s0 + $0x40] sm:$0xff]
    %v49 = vld [vmem:[%s0 + $0x48] sm:$0xff]
    %v50 = vld [vmem:[%s0 + $0x50] sm:$0xff]
    %v51 = vld [vmem:[%s0 + $0x58] sm:$0xff]
    %v52 = vld [vmem:[%s0 + $0x60] sm:$0xff]
    %v53 = vld [vmem:[%s0 + $0x68] sm:$0xff]
    %v54 = vld [vmem:[%s0 + $0x70] sm:$0xff]
    %v55 = vld [vmem:[%s0 + $0x78] sm:$0xff]
    %v56 = vld [vmem:[%s0 + $0x80] sm:$0xff]
    %v57 = vld [vmem:[%s0 + $0x88] sm:$0xff]
    %v58 = vld [vmem:[%s0 + $0x90] sm:$0xff]
    %v59 = vld [vmem:[%s0 + $0x98] sm:$0xff]
    %v60 = vld [vmem:[%s0 + $0xa0] sm:$0xff]
    %v61 = vld [vmem:[%s0 + $0xa8] sm:$0xff]
    %v62 = vld [vmem:[%s0 + $0xb0] sm:$0xff]
    %v63 = vld [vmem:[%s0 + $0xb8] sm:$0xff]
    %v64 = vld [vmem:[%s0 + $0xc0] sm:$0xff]
    %v65 = vld [vmem:[%s0 + $0xc8] sm:$0xff]
    %v66 = vld [vmem:[%s0 + $0xd0] sm:$0xff]
    %v67 = vld [vmem:[%s0 + $0xd8] sm:$0xff]
    %v68 = vld [vmem:[%s0 + $0xe0] sm:$0xff]
    %v69 = vld [vmem:[%s0 + $0xe8] sm:$0xff]
    %v70 = vld [vmem:[%s0 + $0xf0] sm:$0xff]
    %v71 = vld [vmem:[%s0 + $0xf8] sm:$0xff]
    %v72 = vunpack.c.l.bf16 %v40
    %v73 = vunpack.c.h.bf16 %v40
    %v74 = vunpack.c.l.bf16 %v41
    %v75 = vunpack.c.h.bf16 %v41
    %v76 = vunpack.c.l.bf16 %v42
    %v77 = vunpack.c.h.bf16 %v42
    %v78 = vunpack.c.l.bf16 %v43
    %v79 = vunpack.c.h.bf16 %v43
    %v80 = vunpack.c.l.bf16 %v44
    %v81 = vunpack.c.h.bf16 %v44
    %v82 = vunpack.c.l.bf16 %v45
    %v83 = vunpack.c.h.bf16 %v45
    %v84 = vunpack.c.l.bf16 %v46
    %v85 = vunpack.c.h.bf16 %v46
    %v86 = vunpack.c.l.bf16 %v47
    %v87 = vunpack.c.h.bf16 %v47
    %v88 = vunpack.c.l.bf16 %v48
    %v89 = vunpack.c.h.bf16 %v48
    %v90 = vunpack.c.l.bf16 %v49
    %v91 = vunpack.c.h.bf16 %v49
    %v92 = vunpack.c.l.bf16 %v50
    %v93 = vunpack.c.h.bf16 %v50
    %v94 = vunpack.c.l.bf16 %v51
    %v95 = vunpack.c.h.bf16 %v51
    %v96 = vunpack.c.l.bf16 %v52
    %v97 = vunpack.c.h.bf16 %v52
    %v98 = vunpack.c.l.bf16 %v53
    %v99 = vunpack.c.h.bf16 %v53
    %v100 = vunpack.c.l.bf16 %v54
    %v101 = vunpack.c.h.bf16 %v54
    %v102 = vunpack.c.l.bf16 %v55
    %v103 = vunpack.c.h.bf16 %v55
    %v104 = vunpack.c.l.bf16 %v56
    %v105 = vunpack.c.h.bf16 %v56
    %v106 = vunpack.c.l.bf16 %v57
    %v107 = vunpack.c.h.bf16 %v57
    %v108 = vunpack.c.l.bf16 %v58
    %v109 = vunpack.c.h.bf16 %v58
    %v110 = vunpack.c.l.bf16 %v59
    %v111 = vunpack.c.h.bf16 %v59
    %v112 = vunpack.c.l.bf16 %v60
    %v113 = vunpack.c.h.bf16 %v60
    %v114 = vunpack.c.l.bf16 %v61
    %v115 = vunpack.c.h.bf16 %v61
    %v116 = vunpack.c.l.bf16 %v62
    %v117 = vunpack.c.h.bf16 %v62
    %v118 = vunpack.c.l.bf16 %v63
    %v119 = vunpack.c.h.bf16 %v63
    %v120 = vunpack.c.l.bf16 %v64
    %v121 = vunpack.c.h.bf16 %v64
    %v122 = vunpack.c.l.bf16 %v65
    %v123 = vunpack.c.h.bf16 %v65
    %v124 = vunpack.c.l.bf16 %v66
    %v125 = vunpack.c.h.bf16 %v66
    %v126 = vunpack.c.l.bf16 %v67
    %v127 = vunpack.c.h.bf16 %v67
    %v128 = vunpack.c.l.bf16 %v68
    %v129 = vunpack.c.h.bf16 %v68
    %v130 = vunpack.c.l.bf16 %v69
    %v131 = vunpack.c.h.bf16 %v69
    %v132 = vunpack.c.l.bf16 %v70
    %v133 = vunpack.c.h.bf16 %v70
    %v134 = vunpack.c.l.bf16 %v71
    %v135 = vunpack.c.h.bf16 %v71
    %v136 = vadd.f32 %v72, %v88
    %v137 = vrot.slane %v136, 4
    %v138 = vadd.f32 %v136, %v137
    %v139 = vrot.slane %v138, 2
    %v140 = vadd.f32 %v138, %v139
    %v141 = vrot.slane %v140, 1
    %v142 = vadd.f32 %v140, %v141
    %v143 = vadd.f32 %v73, %v89
    %v144 = vrot.slane %v143, 4
    %v145 = vadd.f32 %v143, %v144
    %v146 = vrot.slane %v145, 2
    %v147 = vadd.f32 %v145, %v146
    %v148 = vrot.slane %v147, 1
    %v149 = vadd.f32 %v147, %v148
    %v150 = vadd.f32 %v74, %v90
    %v151 = vrot.slane %v150, 4
    %v152 = vadd.f32 %v150, %v151
    %v153 = vrot.slane %v152, 2
    %v154 = vadd.f32 %v152, %v153
    %v155 = vrot.slane %v154, 1
    %v156 = vadd.f32 %v154, %v155
    %v157 = vadd.f32 %v75, %v91
    %v158 = vrot.slane %v157, 4
    %v159 = vadd.f32 %v157, %v158
    %v160 = vrot.slane %v159, 2
    %v161 = vadd.f32 %v159, %v160
    %v162 = vrot.slane %v161, 1
    %v163 = vadd.f32 %v161, %v162
    %v164 = vadd.f32 %v76, %v92
    %v165 = vrot.slane %v164, 4
    %v166 = vadd.f32 %v164, %v165
    %v167 = vrot.slane %v166, 2
    %v168 = vadd.f32 %v166, %v167
    %v169 = vrot.slane %v168, 1
    %v170 = vadd.f32 %v168, %v169
    %v171 = vadd.f32 %v77, %v93
    %v172 = vrot.slane %v171, 4
    %v173 = vadd.f32 %v171, %v172
    %v174 = vrot.slane %v173, 2
    %v175 = vadd.f32 %v173, %v174
    %v176 = vrot.slane %v175, 1
    %v177 = vadd.f32 %v175, %v176
    %v178 = vadd.f32 %v78, %v94
    %v179 = vrot.slane %v178, 4
    %v180 = vadd.f32 %v178, %v179
    %v181 = vrot.slane %v180, 2
    %v182 = vadd.f32 %v180, %v181
    %v183 = vrot.slane %v182, 1
    %v184 = vadd.f32 %v182, %v183
    %v185 = vadd.f32 %v79, %v95
    %v186 = vrot.slane %v185, 4
    %v187 = vadd.f32 %v185, %v186
    %v188 = vrot.slane %v187, 2
    %v189 = vadd.f32 %v187, %v188
    %v190 = vrot.slane %v189, 1
    %v191 = vadd.f32 %v189, %v190
    %v192 = vadd.f32 %v80, %v96
    %v193 = vrot.slane %v192, 4
    %v194 = vadd.f32 %v192, %v193
    %v195 = vrot.slane %v194, 2
    %v196 = vadd.f32 %v194, %v195
    %v197 = vrot.slane %v196, 1
    %v198 = vadd.f32 %v196, %v197
    %v199 = vadd.f32 %v81, %v97
    %v200 = vrot.slane %v199, 4
    %v201 = vadd.f32 %v199, %v200
    %v202 = vrot.slane %v201, 2
    %v203 = vadd.f32 %v201, %v202
    %v204 = vrot.slane %v203, 1
    %v205 = vadd.f32 %v203, %v204
    %v206 = vadd.f32 %v82, %v98
    %v207 = vrot.slane %v206, 4
    %v208 = vadd.f32 %v206, %v207
    %v209 = vrot.slane %v208, 2
    %v210 = vadd.f32 %v208, %v209
    %v211 = vrot.slane %v210, 1
    %v212 = vadd.f32 %v210, %v211
    %v213 = vadd.f32 %v83, %v99
    %v214 = vrot.slane %v213, 4
    %v215 = vadd.f32 %v213, %v214
    %v216 = vrot.slane %v215, 2
    %v217 = vadd.f32 %v215, %v216
    %v218 = vrot.slane %v217, 1
    %v219 = vadd.f32 %v217, %v218
    %v220 = vadd.f32 %v84, %v100
    %v221 = vrot.slane %v220, 4
    %v222 = vadd.f32 %v220, %v221
    %v223 = vrot.slane %v222, 2
    %v224 = vadd.f32 %v222, %v223
    %v225 = vrot.slane %v224, 1
    %v226 = vadd.f32 %v224, %v225
    %v227 = vadd.f32 %v85, %v101
    %v228 = vrot.slane %v227, 4
    %v229 = vadd.f32 %v227, %v228
    %v230 = vrot.slane %v229, 2
    %v231 = vadd.f32 %v229, %v230
    %v232 = vrot.slane %v231, 1
    %v233 = vadd.f32 %v231, %v232
    %v234 = vadd.f32 %v86, %v102
    %v235 = vrot.slane %v234, 4
    %v236 = vadd.f32 %v234, %v235
    %v237 = vrot.slane %v236, 2
    %v238 = vadd.f32 %v236, %v237
    %v239 = vrot.slane %v238, 1
    %v240 = vadd.f32 %v238, %v239
    %v241 = vadd.f32 %v87, %v103
    %v242 = vrot.slane %v241, 4
    %v243 = vadd.f32 %v241, %v242
    %v244 = vrot.slane %v243, 2
    %v245 = vadd.f32 %v243, %v244
    %v246 = vrot.slane %v245, 1
    %v247 = vadd.f32 %v245, %v246
    %v248 = vadd.f32 %v104, %v120
    %v249 = vrot.slane %v248, 4
    %v250 = vadd.f32 %v248, %v249
    %v251 = vrot.slane %v250, 2
    %v252 = vadd.f32 %v250, %v251
    %v253 = vrot.slane %v252, 1
    %v254 = vadd.f32 %v252, %v253
    %v255 = vadd.f32 %v105, %v121
    %v256 = vrot.slane %v255, 4
    %v257 = vadd.f32 %v255, %v256
    %v258 = vrot.slane %v257, 2
    %v259 = vadd.f32 %v257, %v258
    %v260 = vrot.slane %v259, 1
    %v261 = vadd.f32 %v259, %v260
    %v262 = vadd.f32 %v106, %v122
    %v263 = vrot.slane %v262, 4
    %v264 = vadd.f32 %v262, %v263
    %v265 = vrot.slane %v264, 2
    %v266 = vadd.f32 %v264, %v265
    %v267 = vrot.slane %v266, 1
    %v268 = vadd.f32 %v266, %v267
    %v269 = vadd.f32 %v107, %v123
    %v270 = vrot.slane %v269, 4
    %v271 = vadd.f32 %v269, %v270
    %v272 = vrot.slane %v271, 2
    %v273 = vadd.f32 %v271, %v272
    %v274 = vrot.slane %v273, 1
    %v275 = vadd.f32 %v273, %v274
    %v276 = vadd.f32 %v108, %v124
    %v277 = vrot.slane %v276, 4
    %v278 = vadd.f32 %v276, %v277
    %v279 = vrot.slane %v278, 2
    %v280 = vadd.f32 %v278, %v279
    %v281 = vrot.slane %v280, 1
    %v282 = vadd.f32 %v280, %v281
    %v283 = vadd.f32 %v109, %v125
    %v284 = vrot.slane %v283, 4
    %v285 = vadd.f32 %v283, %v284
    %v286 = vrot.slane %v285, 2
    %v287 = vadd.f32 %v285, %v286
    %v288 = vrot.slane %v287, 1
    %v289 = vadd.f32 %v287, %v288
    %v290 = vadd.f32 %v110, %v126
    %v291 = vrot.slane %v290, 4
    %v292 = vadd.f32 %v290, %v291
    %v293 = vrot.slane %v292, 2
    %v294 = vadd.f32 %v292, %v293
    %v295 = vrot.slane %v294, 1
    %v296 = vadd.f32 %v294, %v295
    %v297 = vadd.f32 %v111, %v127
    %v298 = vrot.slane %v297, 4
    %v299 = vadd.f32 %v297, %v298
    %v300 = vrot.slane %v299, 2
    %v301 = vadd.f32 %v299, %v300
    %v302 = vrot.slane %v301, 1
    %v303 = vadd.f32 %v301, %v302
    %v304 = vadd.f32 %v112, %v128
    %v305 = vrot.slane %v304, 4
    %v306 = vadd.f32 %v304, %v305
    %v307 = vrot.slane %v306, 2
    %v308 = vadd.f32 %v306, %v307
    %v309 = vrot.slane %v308, 1
    %v310 = vadd.f32 %v308, %v309
    %v311 = vadd.f32 %v113, %v129
    %v312 = vrot.slane %v311, 4
    %v313 = vadd.f32 %v311, %v312
    %v314 = vrot.slane %v313, 2
    %v315 = vadd.f32 %v313, %v314
    %v316 = vrot.slane %v315, 1
    %v317 = vadd.f32 %v315, %v316
    %v318 = vadd.f32 %v114, %v130
    %v319 = vrot.slane %v318, 4
    %v320 = vadd.f32 %v318, %v319
    %v321 = vrot.slane %v320, 2
    %v322 = vadd.f32 %v320, %v321
    %v323 = vrot.slane %v322, 1
    %v324 = vadd.f32 %v322, %v323
    %v325 = vadd.f32 %v115, %v131
    %v326 = vrot.slane %v325, 4
    %v327 = vadd.f32 %v325, %v326
    %v328 = vrot.slane %v327, 2
    %v329 = vadd.f32 %v327, %v328
    %v330 = vrot.slane %v329, 1
    %v331 = vadd.f32 %v329, %v330
    %v332 = vadd.f32 %v116, %v132
    %v333 = vrot.slane %v332, 4
    %v334 = vadd.f32 %v332, %v333
    %v335 = vrot.slane %v334, 2
    %v336 = vadd.f32 %v334, %v335
    %v337 = vrot.slane %v336, 1
    %v338 = vadd.f32 %v336, %v337
    %v339 = vadd.f32 %v117, %v133
    %v340 = vrot.slane %v339, 4
    %v341 = vadd.f32 %v339, %v340
    %v342 = vrot.slane %v341, 2
    %v343 = vadd.f32 %v341, %v342
    %v344 = vrot.slane %v343, 1
    %v345 = vadd.f32 %v343, %v344
    %v346 = vadd.f32 %v118, %v134
    %v347 = vrot.slane %v346, 4
    %v348 = vadd.f32 %v346, %v347
    %v349 = vrot.slane %v348, 2
    %v350 = vadd.f32 %v348, %v349
    %v351 = vrot.slane %v350, 1
    %v352 = vadd.f32 %v350, %v351
    %v353 = vadd.f32 %v119, %v135
    %v354 = vrot.slane %v353, 4
    %v355 = vadd.f32 %v353, %v354
    %v356 = vrot.slane %v355, 2
    %v357 = vadd.f32 %v355, %v356
    %v358 = vrot.slane %v357, 1
    %v359 = vadd.f32 %v357, %v358
    %v360 = vmul.f32 %v142, 0.0625
    %v361 = vmul.f32 %v149, 0.0625
    %v362 = vmul.f32 %v156, 0.0625
    %v363 = vmul.f32 %v163, 0.0625
    %v364 = vmul.f32 %v170, 0.0625
    %v365 = vmul.f32 %v177, 0.0625
    %v366 = vmul.f32 %v184, 0.0625
    %v367 = vmul.f32 %v191, 0.0625
    %v368 = vmul.f32 %v198, 0.0625
    %v369 = vmul.f32 %v205, 0.0625
    %v370 = vmul.f32 %v212, 0.0625
    %v371 = vmul.f32 %v219, 0.0625
    %v372 = vmul.f32 %v226, 0.0625
    %v373 = vmul.f32 %v233, 0.0625
    %v374 = vmul.f32 %v240, 0.0625
    %v375 = vmul.f32 %v247, 0.0625
    %v376 = vmul.f32 %v254, 0.0625
    %v377 = vmul.f32 %v261, 0.0625
    %v378 = vmul.f32 %v268, 0.0625
    %v379 = vmul.f32 %v275, 0.0625
    %v380 = vmul.f32 %v282, 0.0625
    %v381 = vmul.f32 %v289, 0.0625
    %v382 = vmul.f32 %v296, 0.0625
    %v383 = vmul.f32 %v303, 0.0625
    %v384 = vmul.f32 %v310, 0.0625
    %v385 = vmul.f32 %v317, 0.0625
    %v386 = vmul.f32 %v324, 0.0625
    %v387 = vmul.f32 %v331, 0.0625
    %v388 = vmul.f32 %v338, 0.0625
    %v389 = vmul.f32 %v345, 0.0625
    %v390 = vmul.f32 %v352, 0.0625
    %v391 = vmul.f32 %v359, 0.0625
    %v392 = vpack.c.bf16 %v360, %v360
    %v393 = vpack.c.bf16 %v361, %v361
    %v394 = vpack.c.bf16 %v362, %v362
    %v395 = vpack.c.bf16 %v363, %v363
    %v396 = vpack.c.bf16 %v364, %v364
    %v397 = vpack.c.bf16 %v365, %v365
    %v398 = vpack.c.bf16 %v366, %v366
    %v399 = vpack.c.bf16 %v367, %v367
    %v400 = vpack.c.bf16 %v368, %v368
    %v401 = vpack.c.bf16 %v369, %v369
    %v402 = vpack.c.bf16 %v370, %v370
    %v403 = vpack.c.bf16 %v371, %v371
    %v404 = vpack.c.bf16 %v372, %v372
    %v405 = vpack.c.bf16 %v373, %v373
    %v406 = vpack.c.bf16 %v374, %v374
    %v407 = vpack.c.bf16 %v375, %v375
    %v408 = vpack.c.bf16 %v376, %v376
    %v409 = vpack.c.bf16 %v377, %v377
    %v410 = vpack.c.bf16 %v378, %v378
    %v411 = vpack.c.bf16 %v379, %v379
    %v412 = vpack.c.bf16 %v380, %v380
    %v413 = vpack.c.bf16 %v381, %v381
    %v414 = vpack.c.bf16 %v382, %v382
    %v415 = vpack.c.bf16 %v383, %v383
    %v416 = vpack.c.bf16 %v384, %v384
    %v417 = vpack.c.bf16 %v385, %v385
    %v418 = vpack.c.bf16 %v386, %v386
    %v419 = vpack.c.bf16 %v387, %v387
    %v420 = vpack.c.bf16 %v388, %v388
    %v421 = vpack.c.bf16 %v389, %v389
    %v422 = vpack.c.bf16 %v390, %v390
    %v423 = vpack.c.bf16 %v391, %v391
    %v424 = vld [vmem:[#allocation2] sm:$0xff]
    %v425 = vld [vmem:[#allocation2 + $0x8] sm:$0xff]
    %v426 = vld [vmem:[#allocation2 + $0x10] sm:$0xff]
    %v427 = vld [vmem:[#allocation2 + $0x18] sm:$0xff]
    %v428 = vld [vmem:[#allocation2 + $0x20] sm:$0xff]
    %v429 = vld [vmem:[#allocation2 + $0x28] sm:$0xff]
    %v430 = vld [vmem:[#allocation2 + $0x30] sm:$0xff]
    %v431 = vld [vmem:[#allocation2 + $0x38] sm:$0xff]
    %v432 = vld [vmem:[#allocation2 + $0x40] sm:$0xff]
    %v433 = vld [vmem:[#allocation2 + $0x48] sm:$0xff]
    %v434 = vld [vmem:[#allocation2 + $0x50] sm:$0xff]
    %v435 = vld [vmem:[#allocation2 + $0x58] sm:$0xff]
    %v436 = vld [vmem:[#allocation2 + $0x60] sm:$0xff]
    %v437 = vld [vmem:[#allocation2 + $0x68] sm:$0xff]
    %v438 = vld [vmem:[#allocation2 + $0x70] sm:$0xff]
    %v439 = vld [vmem:[#allocation2 + $0x78] sm:$0xff]
    %v440 = vld [vmem:[#allocation2 + $0x80] sm:$0xff]
    %v441 = vld [vmem:[#allocation2 + $0x88] sm:$0xff]
    %v442 = vld [vmem:[#allocation2 + $0x90] sm:$0xff]
    %v443 = vld [vmem:[#allocation2 + $0x98] sm:$0xff]
    %v444 = vld [vmem:[#allocation2 + $0xa0] sm:$0xff]
    %v445 = vld [vmem:[#allocation2 + $0xa8] sm:$0xff]
    %v446 = vld [vmem:[#allocation2 + $0xb0] sm:$0xff]
    %v447 = vld [vmem:[#allocation2 + $0xb8] sm:$0xff]
    %v448 = vld [vmem:[#allocation2 + $0xc0] sm:$0xff]
    %v449 = vld [vmem:[#allocation2 + $0xc8] sm:$0xff]
    %v450 = vld [vmem:[#allocation2 + $0xd0] sm:$0xff]
    %v451 = vld [vmem:[#allocation2 + $0xd8] sm:$0xff]
    %v452 = vld [vmem:[#allocation2 + $0xe0] sm:$0xff]
    %v453 = vld [vmem:[#allocation2 + $0xe8] sm:$0xff]
    %v454 = vld [vmem:[#allocation2 + $0xf0] sm:$0xff]
    %v455 = vld [vmem:[#allocation2 + $0xf8] sm:$0xff]
    %v456 = vld [vmem:[#allocation2 + $0x100] sm:$0xff]
    %v457 = vld [vmem:[#allocation2 + $0x108] sm:$0xff]
    %v458 = vld [vmem:[#allocation2 + $0x110] sm:$0xff]
    %v459 = vld [vmem:[#allocation2 + $0x118] sm:$0xff]
    %v460 = vld [vmem:[#allocation2 + $0x120] sm:$0xff]
    %v461 = vld [vmem:[#allocation2 + $0x128] sm:$0xff]
    %v462 = vld [vmem:[#allocation2 + $0x130] sm:$0xff]
    %v463 = vld [vmem:[#allocation2 + $0x138] sm:$0xff]
    %v464 = vld [vmem:[#allocation2 + $0x140] sm:$0xff]
    %v465 = vld [vmem:[#allocation2 + $0x148] sm:$0xff]
    %v466 = vld [vmem:[#allocation2 + $0x150] sm:$0xff]
    %v467 = vld [vmem:[#allocation2 + $0x158] sm:$0xff]
    %v468 = vld [vmem:[#allocation2 + $0x160] sm:$0xff]
    %v469 = vld [vmem:[#allocation2 + $0x168] sm:$0xff]
    %v470 = vld [vmem:[#allocation2 + $0x170] sm:$0xff]
    %v471 = vld [vmem:[#allocation2 + $0x178] sm:$0xff]
    %v472 = vld [vmem:[#allocation2 + $0x180] sm:$0xff]
    %v473 = vld [vmem:[#allocation2 + $0x188] sm:$0xff]
    %v474 = vld [vmem:[#allocation2 + $0x190] sm:$0xff]
    %v475 = vld [vmem:[#allocation2 + $0x198] sm:$0xff]
    %v476 = vld [vmem:[#allocation2 + $0x1a0] sm:$0xff]
    %v477 = vld [vmem:[#allocation2 + $0x1a8] sm:$0xff]
    %v478 = vld [vmem:[#allocation2 + $0x1b0] sm:$0xff]
    %v479 = vld [vmem:[#allocation2 + $0x1b8] sm:$0xff]
    %v480 = vld [vmem:[#allocation2 + $0x1c0] sm:$0xff]
    %v481 = vld [vmem:[#allocation2 + $0x1c8] sm:$0xff]
    %v482 = vld [vmem:[#allocation2 + $0x1d0] sm:$0xff]
    %v483 = vld [vmem:[#allocation2 + $0x1d8] sm:$0xff]
    %v484 = vld [vmem:[#allocation2 + $0x1e0] sm:$0xff]
    %v485 = vld [vmem:[#allocation2 + $0x1e8] sm:$0xff]
    %v486 = vld [vmem:[#allocation2 + $0x1f0] sm:$0xff]
    %v487 = vld [vmem:[#allocation2 + $0x1f8] sm:$0xff]
    %v488 = vld [vmem:[#allocation2 + $0x200] sm:$0xff]
    %v489 = vld [vmem:[#allocation2 + $0x208] sm:$0xff]
    %v490 = vld [vmem:[#allocation2 + $0x210] sm:$0xff]
    %v491 = vld [vmem:[#allocation2 + $0x218] sm:$0xff]
    %v492 = vld [vmem:[#allocation2 + $0x220] sm:$0xff]
    %v493 = vld [vmem:[#allocation2 + $0x228] sm:$0xff]
    %v494 = vld [vmem:[#allocation2 + $0x230] sm:$0xff]
    %v495 = vld [vmem:[#allocation2 + $0x238] sm:$0xff]
    %v496 = vld [vmem:[#allocation2 + $0x240] sm:$0xff]
    %v497 = vld [vmem:[#allocation2 + $0x248] sm:$0xff]
    %v498 = vld [vmem:[#allocation2 + $0x250] sm:$0xff]
    %v499 = vld [vmem:[#allocation2 + $0x258] sm:$0xff]
    %v500 = vld [vmem:[#allocation2 + $0x260] sm:$0xff]
    %v501 = vld [vmem:[#allocation2 + $0x268] sm:$0xff]
    %v502 = vld [vmem:[#allocation2 + $0x270] sm:$0xff]
    %v503 = vld [vmem:[#allocation2 + $0x278] sm:$0xff]
    %v504 = vld [vmem:[#allocation2 + $0x280] sm:$0xff]
    %v505 = vld [vmem:[#allocation2 + $0x288] sm:$0xff]
    %v506 = vld [vmem:[#allocation2 + $0x290] sm:$0xff]
    %v507 = vld [vmem:[#allocation2 + $0x298] sm:$0xff]
    %v508 = vld [vmem:[#allocation2 + $0x2a0] sm:$0xff]
    %v509 = vld [vmem:[#allocation2 + $0x2a8] sm:$0xff]
    %v510 = vld [vmem:[#allocation2 + $0x2b0] sm:$0xff]
    %v511 = vld [vmem:[#allocation2 + $0x2b8] sm:$0xff]
    %v512 = vld [vmem:[#allocation2 + $0x2c0] sm:$0xff]
    %v513 = vld [vmem:[#allocation2 + $0x2c8] sm:$0xff]
    %v514 = vld [vmem:[#allocation2 + $0x2d0] sm:$0xff]
    %v515 = vld [vmem:[#allocation2 + $0x2d8] sm:$0xff]
    %v516 = vld [vmem:[#allocation2 + $0x2e0] sm:$0xff]
    %v517 = vld [vmem:[#allocation2 + $0x2e8] sm:$0xff]
    %v518 = vld [vmem:[#allocation2 + $0x2f0] sm:$0xff]
    %v519 = vld [vmem:[#allocation2 + $0x2f8] sm:$0xff]
    %v520 = vld [vmem:[#allocation2 + $0x300] sm:$0xff]
    %v521 = vld [vmem:[#allocation2 + $0x308] sm:$0xff]
    %v522 = vld [vmem:[#allocation2 + $0x310] sm:$0xff]
    %v523 = vld [vmem:[#allocation2 + $0x318] sm:$0xff]
    %v524 = vld [vmem:[#allocation2 + $0x320] sm:$0xff]
    %v525 = vld [vmem:[#allocation2 + $0x328] sm:$0xff]
    %v526 = vld [vmem:[#allocation2 + $0x330] sm:$0xff]
    %v527 = vld [vmem:[#allocation2 + $0x338] sm:$0xff]
    %v528 = vld [vmem:[#allocation2 + $0x340] sm:$0xff]
    %v529 = vld [vmem:[#allocation2 + $0x348] sm:$0xff]
    %v530 = vld [vmem:[#allocation2 + $0x350] sm:$0xff]
    %v531 = vld [vmem:[#allocation2 + $0x358] sm:$0xff]
    %v532 = vld [vmem:[#allocation2 + $0x360] sm:$0xff]
    %v533 = vld [vmem:[#allocation2 + $0x368] sm:$0xff]
    %v534 = vld [vmem:[#allocation2 + $0x370] sm:$0xff]
    %v535 = vld [vmem:[#allocation2 + $0x378] sm:$0xff]
    %v536 = vld [vmem:[#allocation2 + $0x380] sm:$0xff]
    %v537 = vld [vmem:[#allocation2 + $0x388] sm:$0xff]
    %v538 = vld [vmem:[#allocation2 + $0x390] sm:$0xff]
    %v539 = vld [vmem:[#allocation2 + $0x398] sm:$0xff]
    %v540 = vld [vmem:[#allocation2 + $0x3a0] sm:$0xff]
    %v541 = vld [vmem:[#allocation2 + $0x3a8] sm:$0xff]
    %v542 = vld [vmem:[#allocation2 + $0x3b0] sm:$0xff]
    %v543 = vld [vmem:[#allocation2 + $0x3b8] sm:$0xff]
    %v544 = vld [vmem:[#allocation2 + $0x3c0] sm:$0xff]
    %v545 = vld [vmem:[#allocation2 + $0x3c8] sm:$0xff]
    %v546 = vld [vmem:[#allocation2 + $0x3d0] sm:$0xff]
    %v547 = vld [vmem:[#allocation2 + $0x3d8] sm:$0xff]
    %v548 = vld [vmem:[#allocation2 + $0x3e0] sm:$0xff]
    %v549 = vld [vmem:[#allocation2 + $0x3e8] sm:$0xff]
    %v550 = vld [vmem:[#allocation2 + $0x3f0] sm:$0xff]
    %v551 = vld [vmem:[#allocation2 + $0x3f8] sm:$0xff]
    %v552 = vld [vmem:[#allocation2 + $0x400] sm:$0xff]
    %v553 = vld [vmem:[#allocation2 + $0x408] sm:$0xff]
    %v554 = vld [vmem:[#allocation2 + $0x410] sm:$0xff]
    %v555 = vld [vmem:[#allocation2 + $0x418] sm:$0xff]
    %v556 = vld [vmem:[#allocation2 + $0x420] sm:$0xff]
    %v557 = vld [vmem:[#allocation2 + $0x428] sm:$0xff]
    %v558 = vld [vmem:[#allocation2 + $0x430] sm:$0xff]
    %v559 = vld [vmem:[#allocation2 + $0x438] sm:$0xff]
    %v560 = vld [vmem:[#allocation2 + $0x440] sm:$0xff]
    %v561 = vld [vmem:[#allocation2 + $0x448] sm:$0xff]
    %v562 = vld [vmem:[#allocation2 + $0x450] sm:$0xff]
    %v563 = vld [vmem:[#allocation2 + $0x458] sm:$0xff]
    %v564 = vld [vmem:[#allocation2 + $0x460] sm:$0xff]
    %v565 = vld [vmem:[#allocation2 + $0x468] sm:$0xff]
    %v566 = vld [vmem:[#allocation2 + $0x470] sm:$0xff]
    %v567 = vld [vmem:[#allocation2 + $0x478] sm:$0xff]
    %v568 = vld [vmem:[#allocation2 + $0x480] sm:$0xff]
    %v569 = vld [vmem:[#allocation2 + $0x488] sm:$0xff]
    %v570 = vld [vmem:[#allocation2 + $0x490] sm:$0xff]
    %v571 = vld [vmem:[#allocation2 + $0x498] sm:$0xff]
    %v572 = vld [vmem:[#allocation2 + $0x4a0] sm:$0xff]
    %v573 = vld [vmem:[#allocation2 + $0x4a8] sm:$0xff]
    %v574 = vld [vmem:[#allocation2 + $0x4b0] sm:$0xff]
    %v575 = vld [vmem:[#allocation2 + $0x4b8] sm:$0xff]
    %v576 = vld [vmem:[#allocation2 + $0x4c0] sm:$0xff]
    %v577 = vld [vmem:[#allocation2 + $0x4c8] sm:$0xff]
    %v578 = vld [vmem:[#allocation2 + $0x4d0] sm:$0xff]
    %v579 = vld [vmem:[#allocation2 + $0x4d8] sm:$0xff]
    %v580 = vld [vmem:[#allocation2 + $0x4e0] sm:$0xff]
    %v581 = vld [vmem:[#allocation2 + $0x4e8] sm:$0xff]
    %v582 = vld [vmem:[#allocation2 + $0x4f0] sm:$0xff]
    %v583 = vld [vmem:[#allocation2 + $0x4f8] sm:$0xff]
    %v584 = vld [vmem:[#allocation2 + $0x500] sm:$0xff]
    %v585 = vld [vmem:[#allocation2 + $0x508] sm:$0xff]
    %v586 = vld [vmem:[#allocation2 + $0x510] sm:$0xff]
    %v587 = vld [vmem:[#allocation2 + $0x518] sm:$0xff]
    %v588 = vld [vmem:[#allocation2 + $0x520] sm:$0xff]
    %v589 = vld [vmem:[#allocation2 + $0x528] sm:$0xff]
    %v590 = vld [vmem:[#allocation2 + $0x530] sm:$0xff]
    %v591 = vld [vmem:[#allocation2 + $0x538] sm:$0xff]
    %v592 = vld [vmem:[#allocation2 + $0x540] sm:$0xff]
    %v593 = vld [vmem:[#allocation2 + $0x548] sm:$0xff]
    %v594 = vld [vmem:[#allocation2 + $0x550] sm:$0xff]
    %v595 = vld [vmem:[#allocation2 + $0x558] sm:$0xff]
    %v596 = vld [vmem:[#allocation2 + $0x560] sm:$0xff]
    %v597 = vld [vmem:[#allocation2 + $0x568] sm:$0xff]
    %v598 = vld [vmem:[#allocation2 + $0x570] sm:$0xff]
    %v599 = vld [vmem:[#allocation2 + $0x578] sm:$0xff]
    %v600 = vld [vmem:[#allocation2 + $0x580] sm:$0xff]
    %v601 = vld [vmem:[#allocation2 + $0x588] sm:$0xff]
    %v602 = vld [vmem:[#allocation2 + $0x590] sm:$0xff]
    %v603 = vld [vmem:[#allocation2 + $0x598] sm:$0xff]
    %v604 = vld [vmem:[#allocation2 + $0x5a0] sm:$0xff]
    %v605 = vld [vmem:[#allocation2 + $0x5a8] sm:$0xff]
    %v606 = vld [vmem:[#allocation2 + $0x5b0] sm:$0xff]
    %v607 = vld [vmem:[#allocation2 + $0x5b8] sm:$0xff]
    %v608 = vld [vmem:[#allocation2 + $0x5c0] sm:$0xff]
    %v609 = vld [vmem:[#allocation2 + $0x5c8] sm:$0xff]
    %v610 = vld [vmem:[#allocation2 + $0x5d0] sm:$0xff]
    %v611 = vld [vmem:[#allocation2 + $0x5d8] sm:$0xff]
    %v612 = vld [vmem:[#allocation2 + $0x5e0] sm:$0xff]
    %v613 = vld [vmem:[#allocation2 + $0x5e8] sm:$0xff]
    %v614 = vld [vmem:[#allocation2 + $0x5f0] sm:$0xff]
    %v615 = vld [vmem:[#allocation2 + $0x5f8] sm:$0xff]
    %v616 = vld [vmem:[#allocation2 + $0x600] sm:$0xff]
    %v617 = vld [vmem:[#allocation2 + $0x608] sm:$0xff]
    %v618 = vld [vmem:[#allocation2 + $0x610] sm:$0xff]
    %v619 = vld [vmem:[#allocation2 + $0x618] sm:$0xff]
    %v620 = vld [vmem:[#allocation2 + $0x620] sm:$0xff]
    %v621 = vld [vmem:[#allocation2 + $0x628] sm:$0xff]
    %v622 = vld [vmem:[#allocation2 + $0x630] sm:$0xff]
    %v623 = vld [vmem:[#allocation2 + $0x638] sm:$0xff]
    %v624 = vld [vmem:[#allocation2 + $0x640] sm:$0xff]
    %v625 = vld [vmem:[#allocation2 + $0x648] sm:$0xff]
    %v626 = vld [vmem:[#allocation2 + $0x650] sm:$0xff]
    %v627 = vld [vmem:[#allocation2 + $0x658] sm:$0xff]
    %v628 = vld [vmem:[#allocation2 + $0x660] sm:$0xff]
    %v629 = vld [vmem:[#allocation2 + $0x668] sm:$0xff]
    %v630 = vld [vmem:[#allocation2 + $0x670] sm:$0xff]
    %v631 = vld [vmem:[#allocation2 + $0x678] sm:$0xff]
    %v632 = vld [vmem:[#allocation2 + $0x680] sm:$0xff]
    %v633 = vld [vmem:[#allocation2 + $0x688] sm:$0xff]
    %v634 = vld [vmem:[#allocation2 + $0x690] sm:$0xff]
    %v635 = vld [vmem:[#allocation2 + $0x698] sm:$0xff]
    %v636 = vld [vmem:[#allocation2 + $0x6a0] sm:$0xff]
    %v637 = vld [vmem:[#allocation2 + $0x6a8] sm:$0xff]
    %v638 = vld [vmem:[#allocation2 + $0x6b0] sm:$0xff]
    %v639 = vld [vmem:[#allocation2 + $0x6b8] sm:$0xff]
    %v640 = vld [vmem:[#allocation2 + $0x6c0] sm:$0xff]
    %v641 = vld [vmem:[#allocation2 + $0x6c8] sm:$0xff]
    %v642 = vld [vmem:[#allocation2 + $0x6d0] sm:$0xff]
    %v643 = vld [vmem:[#allocation2 + $0x6d8] sm:$0xff]
    %v644 = vld [vmem:[#allocation2 + $0x6e0] sm:$0xff]
    %v645 = vld [vmem:[#allocation2 + $0x6e8] sm:$0xff]
    %v646 = vld [vmem:[#allocation2 + $0x6f0] sm:$0xff]
    %v647 = vld [vmem:[#allocation2 + $0x6f8] sm:$0xff]
    %v648 = vld [vmem:[#allocation2 + $0x700] sm:$0xff]
    %v649 = vld [vmem:[#allocation2 + $0x708] sm:$0xff]
    %v650 = vld [vmem:[#allocation2 + $0x710] sm:$0xff]
    %v651 = vld [vmem:[#allocation2 + $0x718] sm:$0xff]
    %v652 = vld [vmem:[#allocation2 + $0x720] sm:$0xff]
    %v653 = vld [vmem:[#allocation2 + $0x728] sm:$0xff]
    %v654 = vld [vmem:[#allocation2 + $0x730] sm:$0xff]
    %v655 = vld [vmem:[#allocation2 + $0x738] sm:$0xff]
    %v656 = vld [vmem:[#allocation2 + $0x740] sm:$0xff]
    %v657 = vld [vmem:[#allocation2 + $0x748] sm:$0xff]
    %v658 = vld [vmem:[#allocation2 + $0x750] sm:$0xff]
    %v659 = vld [vmem:[#allocation2 + $0x758] sm:$0xff]
    %v660 = vld [vmem:[#allocation2 + $0x760] sm:$0xff]
    %v661 = vld [vmem:[#allocation2 + $0x768] sm:$0xff]
    %v662 = vld [vmem:[#allocation2 + $0x770] sm:$0xff]
    %v663 = vld [vmem:[#allocation2 + $0x778] sm:$0xff]
    %v664 = vld [vmem:[#allocation2 + $0x780] sm:$0xff]
    %v665 = vld [vmem:[#allocation2 + $0x788] sm:$0xff]
    %v666 = vld [vmem:[#allocation2 + $0x790] sm:$0xff]
    %v667 = vld [vmem:[#allocation2 + $0x798] sm:$0xff]
    %v668 = vld [vmem:[#allocation2 + $0x7a0] sm:$0xff]
    %v669 = vld [vmem:[#allocation2 + $0x7a8] sm:$0xff]
    %v670 = vld [vmem:[#allocation2 + $0x7b0] sm:$0xff]
    %v671 = vld [vmem:[#allocation2 + $0x7b8] sm:$0xff]
    %v672 = vld [vmem:[#allocation2 + $0x7c0] sm:$0xff]
    %v673 = vld [vmem:[#allocation2 + $0x7c8] sm:$0xff]
    %v674 = vld [vmem:[#allocation2 + $0x7d0] sm:$0xff]
    %v675 = vld [vmem:[#allocation2 + $0x7d8] sm:$0xff]
    %v676 = vld [vmem:[#allocation2 + $0x7e0] sm:$0xff]
    %v677 = vld [vmem:[#allocation2 + $0x7e8] sm:$0xff]
    %v678 = vld [vmem:[#allocation2 + $0x7f0] sm:$0xff]
    %v679 = vld [vmem:[#allocation2 + $0x7f8] sm:$0xff]
    %v680 = vld [vmem:[%s2] sm:$0x3]
    %v682 = vperm.slane %v680, 0
    %v683 = vperm.slane %v680, 1
    %v718 = vunpack.c.l.b16 %v392
    %v719 = vunpack.c.l.b16 %v393
    %v720 = vunpack.c.l.b16 %v394
    %v721 = vunpack.c.l.b16 %v395
    %v722 = vunpack.c.l.b16 %v396
    %v723 = vunpack.c.l.b16 %v397
    %v724 = vunpack.c.l.b16 %v398
    %v725 = vunpack.c.l.b16 %v399
    %v726 = vunpack.c.l.b16 %v400
    %v727 = vunpack.c.l.b16 %v401
    %v728 = vunpack.c.l.b16 %v402
    %v729 = vunpack.c.l.b16 %v403
    %v730 = vunpack.c.l.b16 %v404
    %v731 = vunpack.c.l.b16 %v405
    %v732 = vunpack.c.l.b16 %v406
    %v733 = vunpack.c.l.b16 %v407
    %v734 = vunpack.c.l.b16 %v408
    %v735 = vunpack.c.l.b16 %v409
    %v736 = vunpack.c.l.b16 %v410
    %v737 = vunpack.c.l.b16 %v411
    %v738 = vunpack.c.l.b16 %v412
    %v739 = vunpack.c.l.b16 %v413
    %v740 = vunpack.c.l.b16 %v414
    %v741 = vunpack.c.l.b16 %v415
    %v742 = vunpack.c.l.b16 %v416
    %v743 = vunpack.c.l.b16 %v417
    %v744 = vunpack.c.l.b16 %v418
    %v745 = vunpack.c.l.b16 %v419
    %v746 = vunpack.c.l.b16 %v420
    %v747 = vunpack.c.l.b16 %v421
    %v748 = vunpack.c.l.b16 %v422
    %v749 = vunpack.c.l.b16 %v423
    %vm750 = vcmask 1041409
    %v751 = vsel %vm750, %v734, %v718
    %v752 = vsel %vm750, %v735, %v719
    %v753 = vsel %vm750, %v736, %v720
    %v754 = vsel %vm750, %v737, %v721
    %v755 = vsel %vm750, %v738, %v722
    %v756 = vsel %vm750, %v739, %v723
    %v757 = vsel %vm750, %v740, %v724
    %v758 = vsel %vm750, %v741, %v725
    %v759 = vsel %vm750, %v742, %v726
    %v760 = vsel %vm750, %v743, %v727
    %v761 = vsel %vm750, %v744, %v728
    %v762 = vsel %vm750, %v745, %v729
    %v763 = vsel %vm750, %v746, %v730
    %v764 = vsel %vm750, %v747, %v731
    %v765 = vsel %vm750, %v748, %v732
    %v766 = vsel %vm750, %v749, %v733
    %v767 = vpack.c.b16 %v751, %v751
    %v768 = vpack.c.b16 %v752, %v752
    %v769 = vpack.c.b16 %v753, %v753
    %v770 = vpack.c.b16 %v754, %v754
    %v771 = vpack.c.b16 %v755, %v755
    %v772 = vpack.c.b16 %v756, %v756
    %v773 = vpack.c.b16 %v757, %v757
    %v774 = vpack.c.b16 %v758, %v758
    %v775 = vpack.c.b16 %v759, %v759
    %v776 = vpack.c.b16 %v760, %v760
    %v777 = vpack.c.b16 %v761, %v761
    %v778 = vpack.c.b16 %v762, %v762
    %v779 = vpack.c.b16 %v763, %v763
    %v780 = vpack.c.b16 %v764, %v764
    %v781 = vpack.c.b16 %v765, %v765
    %v782 = vpack.c.b16 %v766, %v766
    %v1055 = vunpack.c.l.b16 %v424
    %v1056 = vunpack.c.h.b16 %v424
    %v1057 = vunpack.c.l.b16 %v425
    %v1058 = vunpack.c.h.b16 %v425
    %v1059 = vunpack.c.l.b16 %v426
    %v1060 = vunpack.c.h.b16 %v426
    %v1061 = vunpack.c.l.b16 %v427
    %v1062 = vunpack.c.h.b16 %v427
    %v1063 = vunpack.c.l.b16 %v428
    %v1064 = vunpack.c.h.b16 %v428
    %v1065 = vunpack.c.l.b16 %v429
    %v1066 = vunpack.c.h.b16 %v429
    %v1067 = vunpack.c.l.b16 %v430
    %v1068 = vunpack.c.h.b16 %v430
    %v1069 = vunpack.c.l.b16 %v431
    %v1070 = vunpack.c.h.b16 %v431
    %v1071 = vunpack.c.l.b16 %v432
    %v1072 = vunpack.c.h.b16 %v432
    %v1073 = vunpack.c.l.b16 %v433
    %v1074 = vunpack.c.h.b16 %v433
    %v1075 = vunpack.c.l.b16 %v434
    %v1076 = vunpack.c.h.b16 %v434
    %v1077 = vunpack.c.l.b16 %v435
    %v1078 = vunpack.c.h.b16 %v435
    %v1079 = vunpack.c.l.b16 %v436
    %v1080 = vunpack.c.h.b16 %v436
    %v1081 = vunpack.c.l.b16 %v437
    %v1082 = vunpack.c.h.b16 %v437
    %v1083 = vunpack.c.l.b16 %v438
    %v1084 = vunpack.c.h.b16 %v438
    %v1085 = vunpack.c.l.b16 %v439
    %v1086 = vunpack.c.h.b16 %v439
    %v1087 = vunpack.c.l.b16 %v440
    %v1088 = vunpack.c.h.b16 %v440
    %v1089 = vunpack.c.l.b16 %v441
    %v1090 = vunpack.c.h.b16 %v441
    %v1091 = vunpack.c.l.b16 %v442
    %v1092 = vunpack.c.h.b16 %v442
    %v1093 = vunpack.c.l.b16 %v443
    %v1094 = vunpack.c.h.b16 %v443
    %v1095 = vunpack.c.l.b16 %v444
    %v1096 = vunpack.c.h.b16 %v444
    %v1097 = vunpack.c.l.b16 %v445
    %v1098 = vunpack.c.h.b16 %v445
    %v1099 = vunpack.c.l.b16 %v446
    %v1100 = vunpack.c.h.b16 %v446
    %v1101 = vunpack.c.l.b16 %v447
    %v1102 = vunpack.c.h.b16 %v447
    %v1103 = vunpack.c.l.b16 %v448
    %v1104 = vunpack.c.h.b16 %v448
    %v1105 = vunpack.c.l.b16 %v449
    %v1106 = vunpack.c.h.b16 %v449
    %v1107 = vunpack.c.l.b16 %v450
    %v1108 = vunpack.c.h.b16 %v450
    %v1109 = vunpack.c.l.b16 %v451
    %v1110 = vunpack.c.h.b16 %v451
    %v1111 = vunpack.c.l.b16 %v452
    %v1112 = vunpack.c.h.b16 %v452
    %v1113 = vunpack.c.l.b16 %v453
    %v1114 = vunpack.c.h.b16 %v453
    %v1115 = vunpack.c.l.b16 %v454
    %v1116 = vunpack.c.h.b16 %v454
    %v1117 = vunpack.c.l.b16 %v455
    %v1118 = vunpack.c.h.b16 %v455
    %v1119 = vunpack.c.l.b16 %v456
    %v1120 = vunpack.c.h.b16 %v456
    %v1121 = vunpack.c.l.b16 %v457
    %v1122 = vunpack.c.h.b16 %v457
    %v1123 = vunpack.c.l.b16 %v458
    %v1124 = vunpack.c.h.b16 %v458
    %v1125 = vunpack.c.l.b16 %v459
    %v1126 = vunpack.c.h.b16 %v459
    %v1127 = vunpack.c.l.b16 %v460
    %v1128 = vunpack.c.h.b16 %v460
    %v1129 = vunpack.c.l.b16 %v461
    %v1130 = vunpack.c.h.b16 %v461
    %v1131 = vunpack.c.l.b16 %v462
    %v1132 = vunpack.c.h.b16 %v462
    %v1133 = vunpack.c.l.b16 %v463
    %v1134 = vunpack.c.h.b16 %v463
    %v1135 = vunpack.c.l.b16 %v464
    %v1136 = vunpack.c.h.b16 %v464
    %v1137 = vunpack.c.l.b16 %v465
    %v1138 = vunpack.c.h.b16 %v465
    %v1139 = vunpack.c.l.b16 %v466
    %v1140 = vunpack.c.h.b16 %v466
    %v1141 = vunpack.c.l.b16 %v467
    %v1142 = vunpack.c.h.b16 %v467
    %v1143 = vunpack.c.l.b16 %v468
    %v1144 = vunpack.c.h.b16 %v468
    %v1145 = vunpack.c.l.b16 %v469
    %v1146 = vunpack.c.h.b16 %v469
    %v1147 = vunpack.c.l.b16 %v470
    %v1148 = vunpack.c.h.b16 %v470
    %v1149 = vunpack.c.l.b16 %v471
    %v1150 = vunpack.c.h.b16 %v471
    %v1151 = vunpack.c.l.b16 %v472
    %v1152 = vunpack.c.h.b16 %v472
    %v1153 = vunpack.c.l.b16 %v473
    %v1154 = vunpack.c.h.b16 %v473
    %v1155 = vunpack.c.l.b16 %v474
    %v1156 = vunpack.c.h.b16 %v474
    %v1157 = vunpack.c.l.b16 %v475
    %v1158 = vunpack.c.h.b16 %v475
    %v1159 = vunpack.c.l.b16 %v476
    %v1160 = vunpack.c.h.b16 %v476
    %v1161 = vunpack.c.l.b16 %v477
    %v1162 = vunpack.c.h.b16 %v477
    %v1163 = vunpack.c.l.b16 %v478
    %v1164 = vunpack.c.h.b16 %v478
    %v1165 = vunpack.c.l.b16 %v479
    %v1166 = vunpack.c.h.b16 %v479
    %v1167 = vunpack.c.l.b16 %v480
    %v1168 = vunpack.c.h.b16 %v480
    %v1169 = vunpack.c.l.b16 %v481
    %v1170 = vunpack.c.h.b16 %v481
    %v1171 = vunpack.c.l.b16 %v482
    %v1172 = vunpack.c.h.b16 %v482
    %v1173 = vunpack.c.l.b16 %v483
    %v1174 = vunpack.c.h.b16 %v483
    %v1175 = vunpack.c.l.b16 %v484
    %v1176 = vunpack.c.h.b16 %v484
    %v1177 = vunpack.c.l.b16 %v485
    %v1178 = vunpack.c.h.b16 %v485
    %v1179 = vunpack.c.l.b16 %v486
    %v1180 = vunpack.c.h.b16 %v486
    %v1181 = vunpack.c.l.b16 %v487
    %v1182 = vunpack.c.h.b16 %v487
    %v1183 = vunpack.c.l.b16 %v488
    %v1184 = vunpack.c.h.b16 %v488
    %v1185 = vunpack.c.l.b16 %v489
    %v1186 = vunpack.c.h.b16 %v489
    %v1187 = vunpack.c.l.b16 %v490
    %v1188 = vunpack.c.h.b16 %v490
    %v1189 = vunpack.c.l.b16 %v491
    %v1190 = vunpack.c.h.b16 %v491
    %v1191 = vunpack.c.l.b16 %v492
    %v1192 = vunpack.c.h.b16 %v492
    %v1193 = vunpack.c.l.b16 %v493
    %v1194 = vunpack.c.h.b16 %v493
    %v1195 = vunpack.c.l.b16 %v494
    %v1196 = vunpack.c.h.b16 %v494
    %v1197 = vunpack.c.l.b16 %v495
    %v1198 = vunpack.c.h.b16 %v495
    %v1199 = vunpack.c.l.b16 %v496
    %v1200 = vunpack.c.h.b16 %v496
    %v1201 = vunpack.c.l.b16 %v497
    %v1202 = vunpack.c.h.b16 %v497
    %v1203 = vunpack.c.l.b16 %v498
    %v1204 = vunpack.c.h.b16 %v498
    %v1205 = vunpack.c.l.b16 %v499
    %v1206 = vunpack.c.h.b16 %v499
    %v1207 = vunpack.c.l.b16 %v500
    %v1208 = vunpack.c.h.b16 %v500
    %v1209 = vunpack.c.l.b16 %v501
    %v1210 = vunpack.c.h.b16 %v501
    %v1211 = vunpack.c.l.b16 %v502
    %v1212 = vunpack.c.h.b16 %v502
    %v1213 = vunpack.c.l.b16 %v503
    %v1214 = vunpack.c.h.b16 %v503
    %v1215 = vunpack.c.l.b16 %v504
    %v1216 = vunpack.c.h.b16 %v504
    %v1217 = vunpack.c.l.b16 %v505
    %v1218 = vunpack.c.h.b16 %v505
    %v1219 = vunpack.c.l.b16 %v506
    %v1220 = vunpack.c.h.b16 %v506
    %v1221 = vunpack.c.l.b16 %v507
    %v1222 = vunpack.c.h.b16 %v507
    %v1223 = vunpack.c.l.b16 %v508
    %v1224 = vunpack.c.h.b16 %v508
    %v1225 = vunpack.c.l.b16 %v509
    %v1226 = vunpack.c.h.b16 %v509
    %v1227 = vunpack.c.l.b16 %v510
    %v1228 = vunpack.c.h.b16 %v510
    %v1229 = vunpack.c.l.b16 %v511
    %v1230 = vunpack.c.h.b16 %v511
    %v1231 = vunpack.c.l.b16 %v512
    %v1232 = vunpack.c.h.b16 %v512
    %v1233 = vunpack.c.l.b16 %v513
    %v1234 = vunpack.c.h.b16 %v513
    %v1235 = vunpack.c.l.b16 %v514
    %v1236 = vunpack.c.h.b16 %v514
    %v1237 = vunpack.c.l.b16 %v515
    %v1238 = vunpack.c.h.b16 %v515
    %v1239 = vunpack.c.l.b16 %v516
    %v1240 = vunpack.c.h.b16 %v516
    %v1241 = vunpack.c.l.b16 %v517
    %v1242 = vunpack.c.h.b16 %v517
    %v1243 = vunpack.c.l.b16 %v518
    %v1244 = vunpack.c.h.b16 %v518
    %v1245 = vunpack.c.l.b16 %v519
    %v1246 = vunpack.c.h.b16 %v519
    %v1247 = vunpack.c.l.b16 %v520
    %v1248 = vunpack.c.h.b16 %v520
    %v1249 = vunpack.c.l.b16 %v521
    %v1250 = vunpack.c.h.b16 %v521
    %v1251 = vunpack.c.l.b16 %v522
    %v1252 = vunpack.c.h.b16 %v522
    %v1253 = vunpack.c.l.b16 %v523
    %v1254 = vunpack.c.h.b16 %v523
    %v1255 = vunpack.c.l.b16 %v524
    %v1256 = vunpack.c.h.b16 %v524
    %v1257 = vunpack.c.l.b16 %v525
    %v1258 = vunpack.c.h.b16 %v525
    %v1259 = vunpack.c.l.b16 %v526
    %v1260 = vunpack.c.h.b16 %v526
    %v1261 = vunpack.c.l.b16 %v527
    %v1262 = vunpack.c.h.b16 %v527
    %v1263 = vunpack.c.l.b16 %v528
    %v1264 = vunpack.c.h.b16 %v528
    %v1265 = vunpack.c.l.b16 %v529
    %v1266 = vunpack.c.h.b16 %v529
    %v1267 = vunpack.c.l.b16 %v530
    %v1268 = vunpack.c.h.b16 %v530
    %v1269 = vunpack.c.l.b16 %v531
    %v1270 = vunpack.c.h.b16 %v531
    %v1271 = vunpack.c.l.b16 %v532
    %v1272 = vunpack.c.h.b16 %v532
    %v1273 = vunpack.c.l.b16 %v533
    %v1274 = vunpack.c.h.b16 %v533
    %v1275 = vunpack.c.l.b16 %v534
    %v1276 = vunpack.c.h.b16 %v534
    %v1277 = vunpack.c.l.b16 %v535
    %v1278 = vunpack.c.h.b16 %v535
    %v1279 = vunpack.c.l.b16 %v536
    %v1280 = vunpack.c.h.b16 %v536
    %v1281 = vunpack.c.l.b16 %v537
    %v1282 = vunpack.c.h.b16 %v537
    %v1283 = vunpack.c.l.b16 %v538
    %v1284 = vunpack.c.h.b16 %v538
    %v1285 = vunpack.c.l.b16 %v539
    %v1286 = vunpack.c.h.b16 %v539
    %v1287 = vunpack.c.l.b16 %v540
    %v1288 = vunpack.c.h.b16 %v540
    %v1289 = vunpack.c.l.b16 %v541
    %v1290 = vunpack.c.h.b16 %v541
    %v1291 = vunpack.c.l.b16 %v542
    %v1292 = vunpack.c.h.b16 %v542
    %v1293 = vunpack.c.l.b16 %v543
    %v1294 = vunpack.c.h.b16 %v543
    %v1295 = vunpack.c.l.b16 %v544
    %v1296 = vunpack.c.h.b16 %v544
    %v1297 = vunpack.c.l.b16 %v545
    %v1298 = vunpack.c.h.b16 %v545
    %v1299 = vunpack.c.l.b16 %v546
    %v1300 = vunpack.c.h.b16 %v546
    %v1301 = vunpack.c.l.b16 %v547
    %v1302 = vunpack.c.h.b16 %v547
    %v1303 = vunpack.c.l.b16 %v548
    %v1304 = vunpack.c.h.b16 %v548
    %v1305 = vunpack.c.l.b16 %v549
    %v1306 = vunpack.c.h.b16 %v549
    %v1307 = vunpack.c.l.b16 %v550
    %v1308 = vunpack.c.h.b16 %v550
    %v1309 = vunpack.c.l.b16 %v551
    %v1310 = vunpack.c.h.b16 %v551
    %v1311 = vunpack.c.l.b16 %v552
    %v1312 = vunpack.c.h.b16 %v552
    %v1313 = vunpack.c.l.b16 %v553
    %v1314 = vunpack.c.h.b16 %v553
    %v1315 = vunpack.c.l.b16 %v554
    %v1316 = vunpack.c.h.b16 %v554
    %v1317 = vunpack.c.l.b16 %v555
    %v1318 = vunpack.c.h.b16 %v555
    %v1319 = vunpack.c.l.b16 %v556
    %v1320 = vunpack.c.h.b16 %v556
    %v1321 = vunpack.c.l.b16 %v557
    %v1322 = vunpack.c.h.b16 %v557
    %v1323 = vunpack.c.l.b16 %v558
    %v1324 = vunpack.c.h.b16 %v558
    %v1325 = vunpack.c.l.b16 %v559
    %v1326 = vunpack.c.h.b16 %v559
    %v1327 = vunpack.c.l.b16 %v560
    %v1328 = vunpack.c.h.b16 %v560
    %v1329 = vunpack.c.l.b16 %v561
    %v1330 = vunpack.c.h.b16 %v561
    %v1331 = vunpack.c.l.b16 %v562
    %v1332 = vunpack.c.h.b16 %v562
    %v1333 = vunpack.c.l.b16 %v563
    %v1334 = vunpack.c.h.b16 %v563
    %v1335 = vunpack.c.l.b16 %v564
    %v1336 = vunpack.c.h.b16 %v564
    %v1337 = vunpack.c.l.b16 %v565
    %v1338 = vunpack.c.h.b16 %v565
    %v1339 = vunpack.c.l.b16 %v566
    %v1340 = vunpack.c.h.b16 %v566
    %v1341 = vunpack.c.l.b16 %v567
    %v1342 = vunpack.c.h.b16 %v567
    %v1343 = vunpack.c.l.b16 %v568
    %v1344 = vunpack.c.h.b16 %v568
    %v1345 = vunpack.c.l.b16 %v569
    %v1346 = vunpack.c.h.b16 %v569
    %v1347 = vunpack.c.l.b16 %v570
    %v1348 = vunpack.c.h.b16 %v570
    %v1349 = vunpack.c.l.b16 %v571
    %v1350 = vunpack.c.h.b16 %v571
    %v1351 = vunpack.c.l.b16 %v572
    %v1352 = vunpack.c.h.b16 %v572
    %v1353 = vunpack.c.l.b16 %v573
    %v1354 = vunpack.c.h.b16 %v573
    %v1355 = vunpack.c.l.b16 %v574
    %v1356 = vunpack.c.h.b16 %v574
    %v1357 = vunpack.c.l.b16 %v575
    %v1358 = vunpack.c.h.b16 %v575
    %v1359 = vunpack.c.l.b16 %v576
    %v1360 = vunpack.c.h.b16 %v576
    %v1361 = vunpack.c.l.b16 %v577
    %v1362 = vunpack.c.h.b16 %v577
    %v1363 = vunpack.c.l.b16 %v578
    %v1364 = vunpack.c.h.b16 %v578
    %v1365 = vunpack.c.l.b16 %v579
    %v1366 = vunpack.c.h.b16 %v579
    %v1367 = vunpack.c.l.b16 %v580
    %v1368 = vunpack.c.h.b16 %v580
    %v1369 = vunpack.c.l.b16 %v581
    %v1370 = vunpack.c.h.b16 %v581
    %v1371 = vunpack.c.l.b16 %v582
    %v1372 = vunpack.c.h.b16 %v582
    %v1373 = vunpack.c.l.b16 %v583
    %v1374 = vunpack.c.h.b16 %v583
    %v1375 = vunpack.c.l.b16 %v584
    %v1376 = vunpack.c.h.b16 %v584
    %v1377 = vunpack.c.l.b16 %v585
    %v1378 = vunpack.c.h.b16 %v585
    %v1379 = vunpack.c.l.b16 %v586
    %v1380 = vunpack.c.h.b16 %v586
    %v1381 = vunpack.c.l.b16 %v587
    %v1382 = vunpack.c.h.b16 %v587
    %v1383 = vunpack.c.l.b16 %v588
    %v1384 = vunpack.c.h.b16 %v588
    %v1385 = vunpack.c.l.b16 %v589
    %v1386 = vunpack.c.h.b16 %v589
    %v1387 = vunpack.c.l.b16 %v590
    %v1388 = vunpack.c.h.b16 %v590
    %v1389 = vunpack.c.l.b16 %v591
    %v1390 = vunpack.c.h.b16 %v591
    %v1391 = vunpack.c.l.b16 %v592
    %v1392 = vunpack.c.h.b16 %v592
    %v1393 = vunpack.c.l.b16 %v593
    %v1394 = vunpack.c.h.b16 %v593
    %v1395 = vunpack.c.l.b16 %v594
    %v1396 = vunpack.c.h.b16 %v594
    %v1397 = vunpack.c.l.b16 %v595
    %v1398 = vunpack.c.h.b16 %v595
    %v1399 = vunpack.c.l.b16 %v596
    %v1400 = vunpack.c.h.b16 %v596
    %v1401 = vunpack.c.l.b16 %v597
    %v1402 = vunpack.c.h.b16 %v597
    %v1403 = vunpack.c.l.b16 %v598
    %v1404 = vunpack.c.h.b16 %v598
    %v1405 = vunpack.c.l.b16 %v599
    %v1406 = vunpack.c.h.b16 %v599
    %v1407 = vunpack.c.l.b16 %v600
    %v1408 = vunpack.c.h.b16 %v600
    %v1409 = vunpack.c.l.b16 %v601
    %v1410 = vunpack.c.h.b16 %v601
    %v1411 = vunpack.c.l.b16 %v602
    %v1412 = vunpack.c.h.b16 %v602
    %v1413 = vunpack.c.l.b16 %v603
    %v1414 = vunpack.c.h.b16 %v603
    %v1415 = vunpack.c.l.b16 %v604
    %v1416 = vunpack.c.h.b16 %v604
    %v1417 = vunpack.c.l.b16 %v605
    %v1418 = vunpack.c.h.b16 %v605
    %v1419 = vunpack.c.l.b16 %v606
    %v1420 = vunpack.c.h.b16 %v606
    %v1421 = vunpack.c.l.b16 %v607
    %v1422 = vunpack.c.h.b16 %v607
    %v1423 = vunpack.c.l.b16 %v608
    %v1424 = vunpack.c.h.b16 %v608
    %v1425 = vunpack.c.l.b16 %v609
    %v1426 = vunpack.c.h.b16 %v609
    %v1427 = vunpack.c.l.b16 %v610
    %v1428 = vunpack.c.h.b16 %v610
    %v1429 = vunpack.c.l.b16 %v611
    %v1430 = vunpack.c.h.b16 %v611
    %v1431 = vunpack.c.l.b16 %v612
    %v1432 = vunpack.c.h.b16 %v612
    %v1433 = vunpack.c.l.b16 %v613
    %v1434 = vunpack.c.h.b16 %v613
    %v1435 = vunpack.c.l.b16 %v614
    %v1436 = vunpack.c.h.b16 %v614
    %v1437 = vunpack.c.l.b16 %v615
    %v1438 = vunpack.c.h.b16 %v615
    %v1439 = vunpack.c.l.b16 %v616
    %v1440 = vunpack.c.h.b16 %v616
    %v1441 = vunpack.c.l.b16 %v617
    %v1442 = vunpack.c.h.b16 %v617
    %v1443 = vunpack.c.l.b16 %v618
    %v1444 = vunpack.c.h.b16 %v618
    %v1445 = vunpack.c.l.b16 %v619
    %v1446 = vunpack.c.h.b16 %v619
    %v1447 = vunpack.c.l.b16 %v620
    %v1448 = vunpack.c.h.b16 %v620
    %v1449 = vunpack.c.l.b16 %v621
    %v1450 = vunpack.c.h.b16 %v621
    %v1451 = vunpack.c.l.b16 %v622
    %v1452 = vunpack.c.h.b16 %v622
    %v1453 = vunpack.c.l.b16 %v623
    %v1454 = vunpack.c.h.b16 %v623
    %v1455 = vunpack.c.l.b16 %v624
    %v1456 = vunpack.c.h.b16 %v624
    %v1457 = vunpack.c.l.b16 %v625
    %v1458 = vunpack.c.h.b16 %v625
    %v1459 = vunpack.c.l.b16 %v626
    %v1460 = vunpack.c.h.b16 %v626
    %v1461 = vunpack.c.l.b16 %v627
    %v1462 = vunpack.c.h.b16 %v627
    %v1463 = vunpack.c.l.b16 %v628
    %v1464 = vunpack.c.h.b16 %v628
    %v1465 = vunpack.c.l.b16 %v629
    %v1466 = vunpack.c.h.b16 %v629
    %v1467 = vunpack.c.l.b16 %v630
    %v1468 = vunpack.c.h.b16 %v630
    %v1469 = vunpack.c.l.b16 %v631
    %v1470 = vunpack.c.h.b16 %v631
    %v1471 = vunpack.c.l.b16 %v632
    %v1472 = vunpack.c.h.b16 %v632
    %v1473 = vunpack.c.l.b16 %v633
    %v1474 = vunpack.c.h.b16 %v633
    %v1475 = vunpack.c.l.b16 %v634
    %v1476 = vunpack.c.h.b16 %v634
    %v1477 = vunpack.c.l.b16 %v635
    %v1478 = vunpack.c.h.b16 %v635
    %v1479 = vunpack.c.l.b16 %v636
    %v1480 = vunpack.c.h.b16 %v636
    %v1481 = vunpack.c.l.b16 %v637
    %v1482 = vunpack.c.h.b16 %v637
    %v1483 = vunpack.c.l.b16 %v638
    %v1484 = vunpack.c.h.b16 %v638
    %v1485 = vunpack.c.l.b16 %v639
    %v1486 = vunpack.c.h.b16 %v639
    %v1487 = vunpack.c.l.b16 %v640
    %v1488 = vunpack.c.h.b16 %v640
    %v1489 = vunpack.c.l.b16 %v641
    %v1490 = vunpack.c.h.b16 %v641
    %v1491 = vunpack.c.l.b16 %v642
    %v1492 = vunpack.c.h.b16 %v642
    %v1493 = vunpack.c.l.b16 %v643
    %v1494 = vunpack.c.h.b16 %v643
    %v1495 = vunpack.c.l.b16 %v644
    %v1496 = vunpack.c.h.b16 %v644
    %v1497 = vunpack.c.l.b16 %v645
    %v1498 = vunpack.c.h.b16 %v645
    %v1499 = vunpack.c.l.b16 %v646
    %v1500 = vunpack.c.h.b16 %v646
    %v1501 = vunpack.c.l.b16 %v647
    %v1502 = vunpack.c.h.b16 %v647
    %v1503 = vunpack.c.l.b16 %v648
    %v1504 = vunpack.c.h.b16 %v648
    %v1505 = vunpack.c.l.b16 %v649
    %v1506 = vunpack.c.h.b16 %v649
    %v1507 = vunpack.c.l.b16 %v650
    %v1508 = vunpack.c.h.b16 %v650
    %v1509 = vunpack.c.l.b16 %v651
    %v1510 = vunpack.c.h.b16 %v651
    %v1511 = vunpack.c.l.b16 %v652
    %v1512 = vunpack.c.h.b16 %v652
    %v1513 = vunpack.c.l.b16 %v653
    %v1514 = vunpack.c.h.b16 %v653
    %v1515 = vunpack.c.l.b16 %v654
    %v1516 = vunpack.c.h.b16 %v654
    %v1517 = vunpack.c.l.b16 %v655
    %v1518 = vunpack.c.h.b16 %v655
    %v1519 = vunpack.c.l.b16 %v656
    %v1520 = vunpack.c.h.b16 %v656
    %v1521 = vunpack.c.l.b16 %v657
    %v1522 = vunpack.c.h.b16 %v657
    %v1523 = vunpack.c.l.b16 %v658
    %v1524 = vunpack.c.h.b16 %v658
    %v1525 = vunpack.c.l.b16 %v659
    %v1526 = vunpack.c.h.b16 %v659
    %v1527 = vunpack.c.l.b16 %v660
    %v1528 = vunpack.c.h.b16 %v660
    %v1529 = vunpack.c.l.b16 %v661
    %v1530 = vunpack.c.h.b16 %v661
    %v1531 = vunpack.c.l.b16 %v662
    %v1532 = vunpack.c.h.b16 %v662
    %v1533 = vunpack.c.l.b16 %v663
    %v1534 = vunpack.c.h.b16 %v663
    %v1535 = vunpack.c.l.b16 %v664
    %v1536 = vunpack.c.h.b16 %v664
    %v1537 = vunpack.c.l.b16 %v665
    %v1538 = vunpack.c.h.b16 %v665
    %v1539 = vunpack.c.l.b16 %v666
    %v1540 = vunpack.c.h.b16 %v666
    %v1541 = vunpack.c.l.b16 %v667
    %v1542 = vunpack.c.h.b16 %v667
    %v1543 = vunpack.c.l.b16 %v668
    %v1544 = vunpack.c.h.b16 %v668
    %v1545 = vunpack.c.l.b16 %v669
    %v1546 = vunpack.c.h.b16 %v669
    %v1547 = vunpack.c.l.b16 %v670
    %v1548 = vunpack.c.h.b16 %v670
    %v1549 = vunpack.c.l.b16 %v671
    %v1550 = vunpack.c.h.b16 %v671
    %v1551 = vunpack.c.l.b16 %v672
    %v1552 = vunpack.c.h.b16 %v672
    %v1553 = vunpack.c.l.b16 %v673
    %v1554 = vunpack.c.h.b16 %v673
    %v1555 = vunpack.c.l.b16 %v674
    %v1556 = vunpack.c.h.b16 %v674
    %v1557 = vunpack.c.l.b16 %v675
    %v1558 = vunpack.c.h.b16 %v675
    %v1559 = vunpack.c.l.b16 %v676
    %v1560 = vunpack.c.h.b16 %v676
    %v1561 = vunpack.c.l.b16 %v677
    %v1562 = vunpack.c.h.b16 %v677
    %v1563 = vunpack.c.l.b16 %v678
    %v1564 = vunpack.c.h.b16 %v678
    %v1565 = vunpack.c.l.b16 %v679
    %v1566 = vunpack.c.h.b16 %v679
    %v1567 = vpack.c.b16 %v1057, %v1055
    %v1568 = vpack.c.b16 %v1058, %v1056
    %v1569 = vpack.c.b16 %v1061, %v1059
    %v1570 = vpack.c.b16 %v1062, %v1060
    %v1571 = vpack.c.b16 %v1065, %v1063
    %v1572 = vpack.c.b16 %v1066, %v1064
    %v1573 = vpack.c.b16 %v1069, %v1067
    %v1574 = vpack.c.b16 %v1070, %v1068
    %v1575 = vpack.c.b16 %v1073, %v1071
    %v1576 = vpack.c.b16 %v1074, %v1072
    %v1577 = vpack.c.b16 %v1077, %v1075
    %v1578 = vpack.c.b16 %v1078, %v1076
    %v1579 = vpack.c.b16 %v1081, %v1079
    %v1580 = vpack.c.b16 %v1082, %v1080
    %v1581 = vpack.c.b16 %v1085, %v1083
    %v1582 = vpack.c.b16 %v1086, %v1084
    %v1583 = vpack.c.b16 %v1089, %v1087
    %v1584 = vpack.c.b16 %v1090, %v1088
    %v1585 = vpack.c.b16 %v1093, %v1091
    %v1586 = vpack.c.b16 %v1094, %v1092
    %v1587 = vpack.c.b16 %v1097, %v1095
    %v1588 = vpack.c.b16 %v1098, %v1096
    %v1589 = vpack.c.b16 %v1101, %v1099
    %v1590 = vpack.c.b16 %v1102, %v1100
    %v1591 = vpack.c.b16 %v1105, %v1103
    %v1592 = vpack.c.b16 %v1106, %v1104
    %v1593 = vpack.c.b16 %v1109, %v1107
    %v1594 = vpack.c.b16 %v1110, %v1108
    %v1595 = vpack.c.b16 %v1113, %v1111
    %v1596 = vpack.c.b16 %v1114, %v1112
    %v1597 = vpack.c.b16 %v1117, %v1115
    %v1598 = vpack.c.b16 %v1118, %v1116
    %v1599 = vpack.c.b16 %v1121, %v1119
    %v1600 = vpack.c.b16 %v1122, %v1120
    %v1601 = vpack.c.b16 %v1125, %v1123
    %v1602 = vpack.c.b16 %v1126, %v1124
    %v1603 = vpack.c.b16 %v1129, %v1127
    %v1604 = vpack.c.b16 %v1130, %v1128
    %v1605 = vpack.c.b16 %v1133, %v1131
    %v1606 = vpack.c.b16 %v1134, %v1132
    %v1607 = vpack.c.b16 %v1137, %v1135
    %v1608 = vpack.c.b16 %v1138, %v1136
    %v1609 = vpack.c.b16 %v1141, %v1139
    %v1610 = vpack.c.b16 %v1142, %v1140
    %v1611 = vpack.c.b16 %v1145, %v1143
    %v1612 = vpack.c.b16 %v1146, %v1144
    %v1613 = vpack.c.b16 %v1149, %v1147
    %v1614 = vpack.c.b16 %v1150, %v1148
    %v1615 = vpack.c.b16 %v1153, %v1151
    %v1616 = vpack.c.b16 %v1154, %v1152
    %v1617 = vpack.c.b16 %v1157, %v1155
    %v1618 = vpack.c.b16 %v1158, %v1156
    %v1619 = vpack.c.b16 %v1161, %v1159
    %v1620 = vpack.c.b16 %v1162, %v1160
    %v1621 = vpack.c.b16 %v1165, %v1163
    %v1622 = vpack.c.b16 %v1166, %v1164
    %v1623 = vpack.c.b16 %v1169, %v1167
    %v1624 = vpack.c.b16 %v1170, %v1168
    %v1625 = vpack.c.b16 %v1173, %v1171
    %v1626 = vpack.c.b16 %v1174, %v1172
    %v1627 = vpack.c.b16 %v1177, %v1175
    %v1628 = vpack.c.b16 %v1178, %v1176
    %v1629 = vpack.c.b16 %v1181, %v1179
    %v1630 = vpack.c.b16 %v1182, %v1180
    %v1631 = vpack.c.b16 %v1185, %v1183
    %v1632 = vpack.c.b16 %v1186, %v1184
    %v1633 = vpack.c.b16 %v1189, %v1187
    %v1634 = vpack.c.b16 %v1190, %v1188
    %v1635 = vpack.c.b16 %v1193, %v1191
    %v1636 = vpack.c.b16 %v1194, %v1192
    %v1637 = vpack.c.b16 %v1197, %v1195
    %v1638 = vpack.c.b16 %v1198, %v1196
    %v1639 = vpack.c.b16 %v1201, %v1199
    %v1640 = vpack.c.b16 %v1202, %v1200
    %v1641 = vpack.c.b16 %v1205, %v1203
    %v1642 = vpack.c.b16 %v1206, %v1204
    %v1643 = vpack.c.b16 %v1209, %v1207
    %v1644 = vpack.c.b16 %v1210, %v1208
    %v1645 = vpack.c.b16 %v1213, %v1211
    %v1646 = vpack.c.b16 %v1214, %v1212
    %v1647 = vpack.c.b16 %v1217, %v1215
    %v1648 = vpack.c.b16 %v1218, %v1216
    %v1649 = vpack.c.b16 %v1221, %v1219
    %v1650 = vpack.c.b16 %v1222, %v1220
    %v1651 = vpack.c.b16 %v1225, %v1223
    %v1652 = vpack.c.b16 %v1226, %v1224
    %v1653 = vpack.c.b16 %v1229, %v1227
    %v1654 = vpack.c.b16 %v1230, %v1228
    %v1655 = vpack.c.b16 %v1233, %v1231
    %v1656 = vpack.c.b16 %v1234, %v1232
    %v1657 = vpack.c.b16 %v1237, %v1235
    %v1658 = vpack.c.b16 %v1238, %v1236
    %v1659 = vpack.c.b16 %v1241, %v1239
    %v1660 = vpack.c.b16 %v1242, %v1240
    %v1661 = vpack.c.b16 %v1245, %v1243
    %v1662 = vpack.c.b16 %v1246, %v1244
    %v1663 = vpack.c.b16 %v1249, %v1247
    %v1664 = vpack.c.b16 %v1250, %v1248
    %v1665 = vpack.c.b16 %v1253, %v1251
    %v1666 = vpack.c.b16 %v1254, %v1252
    %v1667 = vpack.c.b16 %v1257, %v1255
    %v1668 = vpack.c.b16 %v1258, %v1256
    %v1669 = vpack.c.b16 %v1261, %v1259
    %v1670 = vpack.c.b16 %v1262, %v1260
    %v1671 = vpack.c.b16 %v1265, %v1263
    %v1672 = vpack.c.b16 %v1266, %v1264
    %v1673 = vpack.c.b16 %v1269, %v1267
    %v1674 = vpack.c.b16 %v1270, %v1268
    %v1675 = vpack.c.b16 %v1273, %v1271
    %v1676 = vpack.c.b16 %v1274, %v1272
    %v1677 = vpack.c.b16 %v1277, %v1275
    %v1678 = vpack.c.b16 %v1278, %v1276
    %v1679 = vpack.c.b16 %v1281, %v1279
    %v1680 = vpack.c.b16 %v1282, %v1280
    %v1681 = vpack.c.b16 %v1285, %v1283
    %v1682 = vpack.c.b16 %v1286, %v1284
    %v1683 = vpack.c.b16 %v1289, %v1287
    %v1684 = vpack.c.b16 %v1290, %v1288
    %v1685 = vpack.c.b16 %v1293, %v1291
    %v1686 = vpack.c.b16 %v1294, %v1292
    %v1687 = vpack.c.b16 %v1297, %v1295
    %v1688 = vpack.c.b16 %v1298, %v1296
    %v1689 = vpack.c.b16 %v1301, %v1299
    %v1690 = vpack.c.b16 %v1302, %v1300
    %v1691 = vpack.c.b16 %v1305, %v1303
    %v1692 = vpack.c.b16 %v1306, %v1304
    %v1693 = vpack.c.b16 %v1309, %v1307
    %v1694 = vpack.c.b16 %v1310, %v1308
    %v1695 = vpack.c.b16 %v1313, %v1311
    %v1696 = vpack.c.b16 %v1314, %v1312
    %v1697 = vpack.c.b16 %v1317, %v1315
    %v1698 = vpack.c.b16 %v1318, %v1316
    %v1699 = vpack.c.b16 %v1321, %v1319
    %v1700 = vpack.c.b16 %v1322, %v1320
    %v1701 = vpack.c.b16 %v1325, %v1323
    %v1702 = vpack.c.b16 %v1326, %v1324
    %v1703 = vpack.c.b16 %v1329, %v1327
    %v1704 = vpack.c.b16 %v1330, %v1328
    %v1705 = vpack.c.b16 %v1333, %v1331
    %v1706 = vpack.c.b16 %v1334, %v1332
    %v1707 = vpack.c.b16 %v1337, %v1335
    %v1708 = vpack.c.b16 %v1338, %v1336
    %v1709 = vpack.c.b16 %v1341, %v1339
    %v1710 = vpack.c.b16 %v1342, %v1340
    %v1711 = vpack.c.b16 %v1345, %v1343
    %v1712 = vpack.c.b16 %v1346, %v1344
    %v1713 = vpack.c.b16 %v1349, %v1347
    %v1714 = vpack.c.b16 %v1350, %v1348
    %v1715 = vpack.c.b16 %v1353, %v1351
    %v1716 = vpack.c.b16 %v1354, %v1352
    %v1717 = vpack.c.b16 %v1357, %v1355
    %v1718 = vpack.c.b16 %v1358, %v1356
    %v1719 = vpack.c.b16 %v1361, %v1359
    %v1720 = vpack.c.b16 %v1362, %v1360
    %v1721 = vpack.c.b16 %v1365, %v1363
    %v1722 = vpack.c.b16 %v1366, %v1364
    %v1723 = vpack.c.b16 %v1369, %v1367
    %v1724 = vpack.c.b16 %v1370, %v1368
    %v1725 = vpack.c.b16 %v1373, %v1371
    %v1726 = vpack.c.b16 %v1374, %v1372
    %v1727 = vpack.c.b16 %v1377, %v1375
    %v1728 = vpack.c.b16 %v1378, %v1376
    %v1729 = vpack.c.b16 %v1381, %v1379
    %v1730 = vpack.c.b16 %v1382, %v1380
    %v1731 = vpack.c.b16 %v1385, %v1383
    %v1732 = vpack.c.b16 %v1386, %v1384
    %v1733 = vpack.c.b16 %v1389, %v1387
    %v1734 = vpack.c.b16 %v1390, %v1388
    %v1735 = vpack.c.b16 %v1393, %v1391
    %v1736 = vpack.c.b16 %v1394, %v1392
    %v1737 = vpack.c.b16 %v1397, %v1395
    %v1738 = vpack.c.b16 %v1398, %v1396
    %v1739 = vpack.c.b16 %v1401, %v1399
    %v1740 = vpack.c.b16 %v1402, %v1400
    %v1741 = vpack.c.b16 %v1405, %v1403
    %v1742 = vpack.c.b16 %v1406, %v1404
    %v1743 = vpack.c.b16 %v1409, %v1407
    %v1744 = vpack.c.b16 %v1410, %v1408
    %v1745 = vpack.c.b16 %v1413, %v1411
    %v1746 = vpack.c.b16 %v1414, %v1412
    %v1747 = vpack.c.b16 %v1417, %v1415
    %v1748 = vpack.c.b16 %v1418, %v1416
    %v1749 = vpack.c.b16 %v1421, %v1419
    %v1750 = vpack.c.b16 %v1422, %v1420
    %v1751 = vpack.c.b16 %v1425, %v1423
    %v1752 = vpack.c.b16 %v1426, %v1424
    %v1753 = vpack.c.b16 %v1429, %v1427
    %v1754 = vpack.c.b16 %v1430, %v1428
    %v1755 = vpack.c.b16 %v1433, %v1431
    %v1756 = vpack.c.b16 %v1434, %v1432
    %v1757 = vpack.c.b16 %v1437, %v1435
    %v1758 = vpack.c.b16 %v1438, %v1436
    %v1759 = vpack.c.b16 %v1441, %v1439
    %v1760 = vpack.c.b16 %v1442, %v1440
    %v1761 = vpack.c.b16 %v1445, %v1443
    %v1762 = vpack.c.b16 %v1446, %v1444
    %v1763 = vpack.c.b16 %v1449, %v1447
    %v1764 = vpack.c.b16 %v1450, %v1448
    %v1765 = vpack.c.b16 %v1453, %v1451
    %v1766 = vpack.c.b16 %v1454, %v1452
    %v1767 = vpack.c.b16 %v1457, %v1455
    %v1768 = vpack.c.b16 %v1458, %v1456
    %v1769 = vpack.c.b16 %v1461, %v1459
    %v1770 = vpack.c.b16 %v1462, %v1460
    %v1771 = vpack.c.b16 %v1465, %v1463
    %v1772 = vpack.c.b16 %v1466, %v1464
    %v1773 = vpack.c.b16 %v1469, %v1467
    %v1774 = vpack.c.b16 %v1470, %v1468
    %v1775 = vpack.c.b16 %v1473, %v1471
    %v1776 = vpack.c.b16 %v1474, %v1472
    %v1777 = vpack.c.b16 %v1477, %v1475
    %v1778 = vpack.c.b16 %v1478, %v1476
    %v1779 = vpack.c.b16 %v1481, %v1479
    %v1780 = vpack.c.b16 %v1482, %v1480
    %v1781 = vpack.c.b16 %v1485, %v1483
    %v1782 = vpack.c.b16 %v1486, %v1484
    %v1783 = vpack.c.b16 %v1489, %v1487
    %v1784 = vpack.c.b16 %v1490, %v1488
    %v1785 = vpack.c.b16 %v1493, %v1491
    %v1786 = vpack.c.b16 %v1494, %v1492
    %v1787 = vpack.c.b16 %v1497, %v1495
    %v1788 = vpack.c.b16 %v1498, %v1496
    %v1789 = vpack.c.b16 %v1501, %v1499
    %v1790 = vpack.c.b16 %v1502, %v1500
    %v1791 = vpack.c.b16 %v1505, %v1503
    %v1792 = vpack.c.b16 %v1506, %v1504
    %v1793 = vpack.c.b16 %v1509, %v1507
    %v1794 = vpack.c.b16 %v1510, %v1508
    %v1795 = vpack.c.b16 %v1513, %v1511
    %v1796 = vpack.c.b16 %v1514, %v1512
    %v1797 = vpack.c.b16 %v1517, %v1515
    %v1798 = vpack.c.b16 %v1518, %v1516
    %v1799 = vpack.c.b16 %v1521, %v1519
    %v1800 = vpack.c.b16 %v1522, %v1520
    %v1801 = vpack.c.b16 %v1525, %v1523
    %v1802 = vpack.c.b16 %v1526, %v1524
    %v1803 = vpack.c.b16 %v1529, %v1527
    %v1804 = vpack.c.b16 %v1530, %v1528
    %v1805 = vpack.c.b16 %v1533, %v1531
    %v1806 = vpack.c.b16 %v1534, %v1532
    %v1807 = vpack.c.b16 %v1537, %v1535
    %v1808 = vpack.c.b16 %v1538, %v1536
    %v1809 = vpack.c.b16 %v1541, %v1539
    %v1810 = vpack.c.b16 %v1542, %v1540
    %v1811 = vpack.c.b16 %v1545, %v1543
    %v1812 = vpack.c.b16 %v1546, %v1544
    %v1813 = vpack.c.b16 %v1549, %v1547
    %v1814 = vpack.c.b16 %v1550, %v1548
    %v1815 = vpack.c.b16 %v1553, %v1551
    %v1816 = vpack.c.b16 %v1554, %v1552
    %v1817 = vpack.c.b16 %v1557, %v1555
    %v1818 = vpack.c.b16 %v1558, %v1556
    %v1819 = vpack.c.b16 %v1561, %v1559
    %v1820 = vpack.c.b16 %v1562, %v1560
    %v1821 = vpack.c.b16 %v1565, %v1563
    %v1822 = vpack.c.b16 %v1566, %v1564
    %2079 = vmatpush.bf16.msra.mxu0 %v1581
    %2080 = vmatpush.bf16.msra.mxu0 %v1579
    %2081 = vmatpush.bf16.msra.mxu0 %v1577
    %2082 = vmatpush.bf16.msra.mxu0 %v1575
    %2083 = vmatpush.bf16.msra.mxu0 %v1573
    %2084 = vmatpush.bf16.msra.mxu0 %v1571
    %2085 = vmatpush.bf16.msra.mxu0 %v1569
    %2086 = vmatpush.bf16.msra.mxu0 %v1567
    %2087 = vmatmul.bf16.gmra.mxu0 %v767
    %v2088 = vpop.f32.mrf.mxu0
    %v2089 = vadd.f32 %v682, %v2088
    %v2090 = vpop.f32.mrf.mxu0
    %2091 = vdwg.mxu0
    %2092 = vmatpush.bf16.msra.mxu0 %v1597
    %2093 = vmatpush.bf16.msra.mxu0 %v1595
    %2094 = vmatpush.bf16.msra.mxu0 %v1593
    %2095 = vmatpush.bf16.msra.mxu0 %v1591
    %2096 = vmatpush.bf16.msra.mxu0 %v1589
    %2097 = vmatpush.bf16.msra.mxu0 %v1587
    %2098 = vmatpush.bf16.msra.mxu0 %v1585
    %2099 = vmatpush.bf16.msra.mxu0 %v1583
    %2100 = vmatmul.bf16.gmra.mxu0 %v768
    %v2101 = vpop.f32.mrf.mxu0
    %v2102 = vadd.f32 %v2089, %v2101
    %v2103 = vpop.f32.mrf.mxu0
    %2104 = vdwg.mxu0
    %2105 = vmatpush.bf16.msra.mxu0 %v1613
    %2106 = vmatpush.bf16.msra.mxu0 %v1611
    %2107 = vmatpush.bf16.msra.mxu0 %v1609
    %2108 = vmatpush.bf16.msra.mxu0 %v1607
    %2109 = vmatpush.bf16.msra.mxu0 %v1605
    %2110 = vmatpush.bf16.msra.mxu0 %v1603
    %2111 = vmatpush.bf16.msra.mxu0 %v1601
    %2112 = vmatpush.bf16.msra.mxu0 %v1599
    %2113 = vmatmul.bf16.gmra.mxu0 %v769
    %v2114 = vpop.f32.mrf.mxu0
    %v2115 = vadd.f32 %v2102, %v2114
    %v2116 = vpop.f32.mrf.mxu0
    %2117 = vdwg.mxu0
    %2118 = vmatpush.bf16.msra.mxu0 %v1629
    %2119 = vmatpush.bf16.msra.mxu0 %v1627
    %2120 = vmatpush.bf16.msra.mxu0 %v1625
    %2121 = vmatpush.bf16.msra.mxu0 %v1623
    %2122 = vmatpush.bf16.msra.mxu0 %v1621
    %2123 = vmatpush.bf16.msra.mxu0 %v1619
    %2124 = vmatpush.bf16.msra.mxu0 %v1617
    %2125 = vmatpush.bf16.msra.mxu0 %v1615
    %2126 = vmatmul.bf16.gmra.mxu0 %v770
    %v2127 = vpop.f32.mrf.mxu0
    %v2128 = vadd.f32 %v2115, %v2127
    %v2129 = vpop.f32.mrf.mxu0
    %2130 = vdwg.mxu0
    %2131 = vmatpush.bf16.msra.mxu0 %v1645
    %2132 = vmatpush.bf16.msra.mxu0 %v1643
    %2133 = vmatpush.bf16.msra.mxu0 %v1641
    %2134 = vmatpush.bf16.msra.mxu0 %v1639
    %2135 = vmatpush.bf16.msra.mxu0 %v1637
    %2136 = vmatpush.bf16.msra.mxu0 %v1635
    %2137 = vmatpush.bf16.msra.mxu0 %v1633
    %2138 = vmatpush.bf16.msra.mxu0 %v1631
    %2139 = vmatmul.bf16.gmra.mxu0 %v771
    %v2140 = vpop.f32.mrf.mxu0
    %v2141 = vadd.f32 %v2128, %v2140
    %v2142 = vpop.f32.mrf.mxu0
    %2143 = vdwg.mxu0
    %2144 = vmatpush.bf16.msra.mxu0 %v1661
    %2145 = vmatpush.bf16.msra.mxu0 %v1659
    %2146 = vmatpush.bf16.msra.mxu0 %v1657
    %2147 = vmatpush.bf16.msra.mxu0 %v1655
    %2148 = vmatpush.bf16.msra.mxu0 %v1653
    %2149 = vmatpush.bf16.msra.mxu0 %v1651
    %2150 = vmatpush.bf16.msra.mxu0 %v1649
    %2151 = vmatpush.bf16.msra.mxu0 %v1647
    %2152 = vmatmul.bf16.gmra.mxu0 %v772
    %v2153 = vpop.f32.mrf.mxu0
    %v2154 = vadd.f32 %v2141, %v2153
    %v2155 = vpop.f32.mrf.mxu0
    %2156 = vdwg.mxu0
    %2157 = vmatpush.bf16.msra.mxu0 %v1677
    %2158 = vmatpush.bf16.msra.mxu0 %v1675
    %2159 = vmatpush.bf16.msra.mxu0 %v1673
    %2160 = vmatpush.bf16.msra.mxu0 %v1671
    %2161 = vmatpush.bf16.msra.mxu0 %v1669
    %2162 = vmatpush.bf16.msra.mxu0 %v1667
    %2163 = vmatpush.bf16.msra.mxu0 %v1665
    %2164 = vmatpush.bf16.msra.mxu0 %v1663
    %2165 = vmatmul.bf16.gmra.mxu0 %v773
    %v2166 = vpop.f32.mrf.mxu0
    %v2167 = vadd.f32 %v2154, %v2166
    %v2168 = vpop.f32.mrf.mxu0
    %2169 = vdwg.mxu0
    %2170 = vmatpush.bf16.msra.mxu0 %v1693
    %2171 = vmatpush.bf16.msra.mxu0 %v1691
    %2172 = vmatpush.bf16.msra.mxu0 %v1689
    %2173 = vmatpush.bf16.msra.mxu0 %v1687
    %2174 = vmatpush.bf16.msra.mxu0 %v1685
    %2175 = vmatpush.bf16.msra.mxu0 %v1683
    %2176 = vmatpush.bf16.msra.mxu0 %v1681
    %2177 = vmatpush.bf16.msra.mxu0 %v1679
    %2178 = vmatmul.bf16.gmra.mxu0 %v774
    %v2179 = vpop.f32.mrf.mxu0
    %v2180 = vadd.f32 %v2167, %v2179
    %v2181 = vpop.f32.mrf.mxu0
    %2182 = vdwg.mxu0
    %2183 = vmatpush.bf16.msra.mxu0 %v1709
    %2184 = vmatpush.bf16.msra.mxu0 %v1707
    %2185 = vmatpush.bf16.msra.mxu0 %v1705
    %2186 = vmatpush.bf16.msra.mxu0 %v1703
    %2187 = vmatpush.bf16.msra.mxu0 %v1701
    %2188 = vmatpush.bf16.msra.mxu0 %v1699
    %2189 = vmatpush.bf16.msra.mxu0 %v1697
    %2190 = vmatpush.bf16.msra.mxu0 %v1695
    %2191 = vmatmul.bf16.gmra.mxu0 %v775
    %v2192 = vpop.f32.mrf.mxu0
    %v2193 = vadd.f32 %v2180, %v2192
    %v2194 = vpop.f32.mrf.mxu0
    %2195 = vdwg.mxu0
    %2196 = vmatpush.bf16.msra.mxu0 %v1725
    %2197 = vmatpush.bf16.msra.mxu0 %v1723
    %2198 = vmatpush.bf16.msra.mxu0 %v1721
    %2199 = vmatpush.bf16.msra.mxu0 %v1719
    %2200 = vmatpush.bf16.msra.mxu0 %v1717
    %2201 = vmatpush.bf16.msra.mxu0 %v1715
    %2202 = vmatpush.bf16.msra.mxu0 %v1713
    %2203 = vmatpush.bf16.msra.mxu0 %v1711
    %2204 = vmatmul.bf16.gmra.mxu0 %v776
    %v2205 = vpop.f32.mrf.mxu0
    %v2206 = vadd.f32 %v2193, %v2205
    %v2207 = vpop.f32.mrf.mxu0
    %2208 = vdwg.mxu0
    %2209 = vmatpush.bf16.msra.mxu0 %v1741
    %2210 = vmatpush.bf16.msra.mxu0 %v1739
    %2211 = vmatpush.bf16.msra.mxu0 %v1737
    %2212 = vmatpush.bf16.msra.mxu0 %v1735
    %2213 = vmatpush.bf16.msra.mxu0 %v1733
    %2214 = vmatpush.bf16.msra.mxu0 %v1731
    %2215 = vmatpush.bf16.msra.mxu0 %v1729
    %2216 = vmatpush.bf16.msra.mxu0 %v1727
    %2217 = vmatmul.bf16.gmra.mxu0 %v777
    %v2218 = vpop.f32.mrf.mxu0
    %v2219 = vadd.f32 %v2206, %v2218
    %v2220 = vpop.f32.mrf.mxu0
    %2221 = vdwg.mxu0
    %2222 = vmatpush.bf16.msra.mxu0 %v1757
    %2223 = vmatpush.bf16.msra.mxu0 %v1755
    %2224 = vmatpush.bf16.msra.mxu0 %v1753
    %2225 = vmatpush.bf16.msra.mxu0 %v1751
    %2226 = vmatpush.bf16.msra.mxu0 %v1749
    %2227 = vmatpush.bf16.msra.mxu0 %v1747
    %2228 = vmatpush.bf16.msra.mxu0 %v1745
    %2229 = vmatpush.bf16.msra.mxu0 %v1743
    %2230 = vmatmul.bf16.gmra.mxu0 %v778
    %v2231 = vpop.f32.mrf.mxu0
    %v2232 = vadd.f32 %v2219, %v2231
    %v2233 = vpop.f32.mrf.mxu0
    %2234 = vdwg.mxu0
    %2235 = vmatpush.bf16.msra.mxu0 %v1773
    %2236 = vmatpush.bf16.msra.mxu0 %v1771
    %2237 = vmatpush.bf16.msra.mxu0 %v1769
    %2238 = vmatpush.bf16.msra.mxu0 %v1767
    %2239 = vmatpush.bf16.msra.mxu0 %v1765
    %2240 = vmatpush.bf16.msra.mxu0 %v1763
    %2241 = vmatpush.bf16.msra.mxu0 %v1761
    %2242 = vmatpush.bf16.msra.mxu0 %v1759
    %2243 = vmatmul.bf16.gmra.mxu0 %v779
    %v2244 = vpop.f32.mrf.mxu0
    %v2245 = vadd.f32 %v2232, %v2244
    %v2246 = vpop.f32.mrf.mxu0
    %2247 = vdwg.mxu0
    %2248 = vmatpush.bf16.msra.mxu0 %v1789
    %2249 = vmatpush.bf16.msra.mxu0 %v1787
    %2250 = vmatpush.bf16.msra.mxu0 %v1785
    %2251 = vmatpush.bf16.msra.mxu0 %v1783
    %2252 = vmatpush.bf16.msra.mxu0 %v1781
    %2253 = vmatpush.bf16.msra.mxu0 %v1779
    %2254 = vmatpush.bf16.msra.mxu0 %v1777
    %2255 = vmatpush.bf16.msra.mxu0 %v1775
    %2256 = vmatmul.bf16.gmra.mxu0 %v780
    %v2257 = vpop.f32.mrf.mxu0
    %v2258 = vadd.f32 %v2245, %v2257
    %v2259 = vpop.f32.mrf.mxu0
    %2260 = vdwg.mxu0
    %2261 = vmatpush.bf16.msra.mxu0 %v1805
    %2262 = vmatpush.bf16.msra.mxu0 %v1803
    %2263 = vmatpush.bf16.msra.mxu0 %v1801
    %2264 = vmatpush.bf16.msra.mxu0 %v1799
    %2265 = vmatpush.bf16.msra.mxu0 %v1797
    %2266 = vmatpush.bf16.msra.mxu0 %v1795
    %2267 = vmatpush.bf16.msra.mxu0 %v1793
    %2268 = vmatpush.bf16.msra.mxu0 %v1791
    %2269 = vmatmul.bf16.gmra.mxu0 %v781
    %v2270 = vpop.f32.mrf.mxu0
    %v2271 = vadd.f32 %v2258, %v2270
    %v2272 = vpop.f32.mrf.mxu0
    %2273 = vdwg.mxu0
    %2274 = vmatpush.bf16.msra.mxu0 %v1821
    %2275 = vmatpush.bf16.msra.mxu0 %v1819
    %2276 = vmatpush.bf16.msra.mxu0 %v1817
    %2277 = vmatpush.bf16.msra.mxu0 %v1815
    %2278 = vmatpush.bf16.msra.mxu0 %v1813
    %2279 = vmatpush.bf16.msra.mxu0 %v1811
    %2280 = vmatpush.bf16.msra.mxu0 %v1809
    %2281 = vmatpush.bf16.msra.mxu0 %v1807
    %2282 = vmatmul.bf16.gmra.mxu0 %v782
    %v2283 = vpop.f32.mrf.mxu0
    %v2284 = vadd.f32 %v2271, %v2283
    %v2285 = vpop.f32.mrf.mxu0
    %2286 = vdwg.mxu0
    %2287 = vmatpush.bf16.msra.mxu0 %v1582
    %2288 = vmatpush.bf16.msra.mxu0 %v1580
    %2289 = vmatpush.bf16.msra.mxu0 %v1578
    %2290 = vmatpush.bf16.msra.mxu0 %v1576
    %2291 = vmatpush.bf16.msra.mxu0 %v1574
    %2292 = vmatpush.bf16.msra.mxu0 %v1572
    %2293 = vmatpush.bf16.msra.mxu0 %v1570
    %2294 = vmatpush.bf16.msra.mxu0 %v1568
    %2295 = vmatmul.bf16.gmra.mxu0 %v767
    %v2296 = vpop.f32.mrf.mxu0
    %v2297 = vadd.f32 %v683, %v2296
    %v2298 = vpop.f32.mrf.mxu0
    %2299 = vdwg.mxu0
    %2300 = vmatpush.bf16.msra.mxu0 %v1598
    %2301 = vmatpush.bf16.msra.mxu0 %v1596
    %2302 = vmatpush.bf16.msra.mxu0 %v1594
    %2303 = vmatpush.bf16.msra.mxu0 %v1592
    %2304 = vmatpush.bf16.msra.mxu0 %v1590
    %2305 = vmatpush.bf16.msra.mxu0 %v1588
    %2306 = vmatpush.bf16.msra.mxu0 %v1586
    %2307 = vmatpush.bf16.msra.mxu0 %v1584
    %2308 = vmatmul.bf16.gmra.mxu0 %v768
    %v2309 = vpop.f32.mrf.mxu0
    %v2310 = vadd.f32 %v2297, %v2309
    %v2311 = vpop.f32.mrf.mxu0
    %2312 = vdwg.mxu0
    %2313 = vmatpush.bf16.msra.mxu0 %v1614
    %2314 = vmatpush.bf16.msra.mxu0 %v1612
    %2315 = vmatpush.bf16.msra.mxu0 %v1610
    %2316 = vmatpush.bf16.msra.mxu0 %v1608
    %2317 = vmatpush.bf16.msra.mxu0 %v1606
    %2318 = vmatpush.bf16.msra.mxu0 %v1604
    %2319 = vmatpush.bf16.msra.mxu0 %v1602
    %2320 = vmatpush.bf16.msra.mxu0 %v1600
    %2321 = vmatmul.bf16.gmra.mxu0 %v769
    %v2322 = vpop.f32.mrf.mxu0
    %v2323 = vadd.f32 %v2310, %v2322
    %v2324 = vpop.f32.mrf.mxu0
    %2325 = vdwg.mxu0
    %2326 = vmatpush.bf16.msra.mxu0 %v1630
    %2327 = vmatpush.bf16.msra.mxu0 %v1628
    %2328 = vmatpush.bf16.msra.mxu0 %v1626
    %2329 = vmatpush.bf16.msra.mxu0 %v1624
    %2330 = vmatpush.bf16.msra.mxu0 %v1622
    %2331 = vmatpush.bf16.msra.mxu0 %v1620
    %2332 = vmatpush.bf16.msra.mxu0 %v1618
    %2333 = vmatpush.bf16.msra.mxu0 %v1616
    %2334 = vmatmul.bf16.gmra.mxu0 %v770
    %v2335 = vpop.f32.mrf.mxu0
    %v2336 = vadd.f32 %v2323, %v2335
    %v2337 = vpop.f32.mrf.mxu0
    %2338 = vdwg.mxu0
    %2339 = vmatpush.bf16.msra.mxu0 %v1646
    %2340 = vmatpush.bf16.msra.mxu0 %v1644
    %2341 = vmatpush.bf16.msra.mxu0 %v1642
    %2342 = vmatpush.bf16.msra.mxu0 %v1640
    %2343 = vmatpush.bf16.msra.mxu0 %v1638
    %2344 = vmatpush.bf16.msra.mxu0 %v1636
    %2345 = vmatpush.bf16.msra.mxu0 %v1634
    %2346 = vmatpush.bf16.msra.mxu0 %v1632
    %2347 = vmatmul.bf16.gmra.mxu0 %v771
    %v2348 = vpop.f32.mrf.mxu0
    %v2349 = vadd.f32 %v2336, %v2348
    %v2350 = vpop.f32.mrf.mxu0
    %2351 = vdwg.mxu0
    %2352 = vmatpush.bf16.msra.mxu0 %v1662
    %2353 = vmatpush.bf16.msra.mxu0 %v1660
    %2354 = vmatpush.bf16.msra.mxu0 %v1658
    %2355 = vmatpush.bf16.msra.mxu0 %v1656
    %2356 = vmatpush.bf16.msra.mxu0 %v1654
    %2357 = vmatpush.bf16.msra.mxu0 %v1652
    %2358 = vmatpush.bf16.msra.mxu0 %v1650
    %2359 = vmatpush.bf16.msra.mxu0 %v1648
    %2360 = vmatmul.bf16.gmra.mxu0 %v772
    %v2361 = vpop.f32.mrf.mxu0
    %v2362 = vadd.f32 %v2349, %v2361
    %v2363 = vpop.f32.mrf.mxu0
    %2364 = vdwg.mxu0
    %2365 = vmatpush.bf16.msra.mxu0 %v1678
    %2366 = vmatpush.bf16.msra.mxu0 %v1676
    %2367 = vmatpush.bf16.msra.mxu0 %v1674
    %2368 = vmatpush.bf16.msra.mxu0 %v1672
    %2369 = vmatpush.bf16.msra.mxu0 %v1670
    %2370 = vmatpush.bf16.msra.mxu0 %v1668
    %2371 = vmatpush.bf16.msra.mxu0 %v1666
    %2372 = vmatpush.bf16.msra.mxu0 %v1664
    %2373 = vmatmul.bf16.gmra.mxu0 %v773
    %v2374 = vpop.f32.mrf.mxu0
    %v2375 = vadd.f32 %v2362, %v2374
    %v2376 = vpop.f32.mrf.mxu0
    %2377 = vdwg.mxu0
    %2378 = vmatpush.bf16.msra.mxu0 %v1694
    %2379 = vmatpush.bf16.msra.mxu0 %v1692
    %2380 = vmatpush.bf16.msra.mxu0 %v1690
    %2381 = vmatpush.bf16.msra.mxu0 %v1688
    %2382 = vmatpush.bf16.msra.mxu0 %v1686
    %2383 = vmatpush.bf16.msra.mxu0 %v1684
    %2384 = vmatpush.bf16.msra.mxu0 %v1682
    %2385 = vmatpush.bf16.msra.mxu0 %v1680
    %2386 = vmatmul.bf16.gmra.mxu0 %v774
    %v2387 = vpop.f32.mrf.mxu0
    %v2388 = vadd.f32 %v2375, %v2387
    %v2389 = vpop.f32.mrf.mxu0
    %2390 = vdwg.mxu0
    %2391 = vmatpush.bf16.msra.mxu0 %v1710
    %2392 = vmatpush.bf16.msra.mxu0 %v1708
    %2393 = vmatpush.bf16.msra.mxu0 %v1706
    %2394 = vmatpush.bf16.msra.mxu0 %v1704
    %2395 = vmatpush.bf16.msra.mxu0 %v1702
    %2396 = vmatpush.bf16.msra.mxu0 %v1700
    %2397 = vmatpush.bf16.msra.mxu0 %v1698
    %2398 = vmatpush.bf16.msra.mxu0 %v1696
    %2399 = vmatmul.bf16.gmra.mxu0 %v775
    %v2400 = vpop.f32.mrf.mxu0
    %v2401 = vadd.f32 %v2388, %v2400
    %v2402 = vpop.f32.mrf.mxu0
    %2403 = vdwg.mxu0
    %2404 = vmatpush.bf16.msra.mxu0 %v1726
    %2405 = vmatpush.bf16.msra.mxu0 %v1724
    %2406 = vmatpush.bf16.msra.mxu0 %v1722
    %2407 = vmatpush.bf16.msra.mxu0 %v1720
    %2408 = vmatpush.bf16.msra.mxu0 %v1718
    %2409 = vmatpush.bf16.msra.mxu0 %v1716
    %2410 = vmatpush.bf16.msra.mxu0 %v1714
    %2411 = vmatpush.bf16.msra.mxu0 %v1712
    %2412 = vmatmul.bf16.gmra.mxu0 %v776
    %v2413 = vpop.f32.mrf.mxu0
    %v2414 = vadd.f32 %v2401, %v2413
    %v2415 = vpop.f32.mrf.mxu0
    %2416 = vdwg.mxu0
    %2417 = vmatpush.bf16.msra.mxu0 %v1742
    %2418 = vmatpush.bf16.msra.mxu0 %v1740
    %2419 = vmatpush.bf16.msra.mxu0 %v1738
    %2420 = vmatpush.bf16.msra.mxu0 %v1736
    %2421 = vmatpush.bf16.msra.mxu0 %v1734
    %2422 = vmatpush.bf16.msra.mxu0 %v1732
    %2423 = vmatpush.bf16.msra.mxu0 %v1730
    %2424 = vmatpush.bf16.msra.mxu0 %v1728
    %2425 = vmatmul.bf16.gmra.mxu0 %v777
    %v2426 = vpop.f32.mrf.mxu0
    %v2427 = vadd.f32 %v2414, %v2426
    %v2428 = vpop.f32.mrf.mxu0
    %2429 = vdwg.mxu0
    %2430 = vmatpush.bf16.msra.mxu0 %v1758
    %2431 = vmatpush.bf16.msra.mxu0 %v1756
    %2432 = vmatpush.bf16.msra.mxu0 %v1754
    %2433 = vmatpush.bf16.msra.mxu0 %v1752
    %2434 = vmatpush.bf16.msra.mxu0 %v1750
    %2435 = vmatpush.bf16.msra.mxu0 %v1748
    %2436 = vmatpush.bf16.msra.mxu0 %v1746
    %2437 = vmatpush.bf16.msra.mxu0 %v1744
    %2438 = vmatmul.bf16.gmra.mxu0 %v778
    %v2439 = vpop.f32.mrf.mxu0
    %v2440 = vadd.f32 %v2427, %v2439
    %v2441 = vpop.f32.mrf.mxu0
    %2442 = vdwg.mxu0
    %2443 = vmatpush.bf16.msra.mxu0 %v1774
    %2444 = vmatpush.bf16.msra.mxu0 %v1772
    %2445 = vmatpush.bf16.msra.mxu0 %v1770
    %2446 = vmatpush.bf16.msra.mxu0 %v1768
    %2447 = vmatpush.bf16.msra.mxu0 %v1766
    %2448 = vmatpush.bf16.msra.mxu0 %v1764
    %2449 = vmatpush.bf16.msra.mxu0 %v1762
    %2450 = vmatpush.bf16.msra.mxu0 %v1760
    %2451 = vmatmul.bf16.gmra.mxu0 %v779
    %v2452 = vpop.f32.mrf.mxu0
    %v2453 = vadd.f32 %v2440, %v2452
    %v2454 = vpop.f32.mrf.mxu0
    %2455 = vdwg.mxu0
    %2456 = vmatpush.bf16.msra.mxu0 %v1790
    %2457 = vmatpush.bf16.msra.mxu0 %v1788
    %2458 = vmatpush.bf16.msra.mxu0 %v1786
    %2459 = vmatpush.bf16.msra.mxu0 %v1784
    %2460 = vmatpush.bf16.msra.mxu0 %v1782
    %2461 = vmatpush.bf16.msra.mxu0 %v1780
    %2462 = vmatpush.bf16.msra.mxu0 %v1778
    %2463 = vmatpush.bf16.msra.mxu0 %v1776
    %2464 = vmatmul.bf16.gmra.mxu0 %v780
    %v2465 = vpop.f32.mrf.mxu0
    %v2466 = vadd.f32 %v2453, %v2465
    %v2467 = vpop.f32.mrf.mxu0
    %2468 = vdwg.mxu0
    %2469 = vmatpush.bf16.msra.mxu0 %v1806
    %2470 = vmatpush.bf16.msra.mxu0 %v1804
    %2471 = vmatpush.bf16.msra.mxu0 %v1802
    %2472 = vmatpush.bf16.msra.mxu0 %v1800
    %2473 = vmatpush.bf16.msra.mxu0 %v1798
    %2474 = vmatpush.bf16.msra.mxu0 %v1796
    %2475 = vmatpush.bf16.msra.mxu0 %v1794
    %2476 = vmatpush.bf16.msra.mxu0 %v1792
    %2477 = vmatmul.bf16.gmra.mxu0 %v781
    %v2478 = vpop.f32.mrf.mxu0
    %v2479 = vadd.f32 %v2466, %v2478
    %v2480 = vpop.f32.mrf.mxu0
    %2481 = vdwg.mxu0
    %2482 = vmatpush.bf16.msra.mxu0 %v1822
    %2483 = vmatpush.bf16.msra.mxu0 %v1820
    %2484 = vmatpush.bf16.msra.mxu0 %v1818
    %2485 = vmatpush.bf16.msra.mxu0 %v1816
    %2486 = vmatpush.bf16.msra.mxu0 %v1814
    %2487 = vmatpush.bf16.msra.mxu0 %v1812
    %2488 = vmatpush.bf16.msra.mxu0 %v1810
    %2489 = vmatpush.bf16.msra.mxu0 %v1808
    %2490 = vmatmul.bf16.gmra.mxu0 %v782
    %v2491 = vpop.f32.mrf.mxu0
    %v2492 = vadd.f32 %v2479, %v2491
    %v2493 = vpop.f32.mrf.mxu0
    %2494 = vdwg.mxu0
    %v2497 = vrot.slane %v2492, 6
    %vm2498 = vcmask 1041408
    %v2499 = vsel %vm2498, %v2284, %v2497
    %2501 = vst [vmem:[#allocation5] sm:$0xf] %v2499
    %v2502 = vpack.c.bf16 %v2284, %v2284
    %v2503 = vpack.c.bf16 %v2492, %v2492
    %v2504 = vld [vmem:[%s3] sm:$0xf]
    %v2505 = vld [vmem:[%s3 + $0x4] sm:$0xf]
    %v2506 = vld [vmem:[%s3 + $0x8] sm:$0xf]
    %v2507 = vld [vmem:[%s3 + $0xc] sm:$0xf]
    %v2508 = vld [vmem:[%s3 + $0x10] sm:$0xf]
    %v2509 = vld [vmem:[%s3 + $0x14] sm:$0xf]
    %v2510 = vld [vmem:[%s3 + $0x18] sm:$0xf]
    %v2511 = vld [vmem:[%s3 + $0x1c] sm:$0xf]
    %v2512 = vld [vmem:[%s3 + $0x20] sm:$0xf]
    %v2513 = vld [vmem:[%s3 + $0x24] sm:$0xf]
    %v2514 = vld [vmem:[%s3 + $0x28] sm:$0xf]
    %v2515 = vld [vmem:[%s3 + $0x2c] sm:$0xf]
    %v2516 = vld [vmem:[%s3 + $0x30] sm:$0xf]
    %v2517 = vld [vmem:[%s3 + $0x34] sm:$0xf]
    %v2518 = vld [vmem:[%s3 + $0x38] sm:$0xf]
    %v2519 = vld [vmem:[%s3 + $0x3c] sm:$0xf]
    %v2520 = vld [vmem:[%s3 + $0x40] sm:$0xf]
    %v2521 = vld [vmem:[%s3 + $0x44] sm:$0xf]
    %v2522 = vld [vmem:[%s3 + $0x48] sm:$0xf]
    %v2523 = vld [vmem:[%s3 + $0x4c] sm:$0xf]
    %v2524 = vld [vmem:[%s3 + $0x50] sm:$0xf]
    %v2525 = vld [vmem:[%s3 + $0x54] sm:$0xf]
    %v2526 = vld [vmem:[%s3 + $0x58] sm:$0xf]
    %v2527 = vld [vmem:[%s3 + $0x5c] sm:$0xf]
    %v2528 = vld [vmem:[%s3 + $0x60] sm:$0xf]
    %v2529 = vld [vmem:[%s3 + $0x64] sm:$0xf]
    %v2530 = vld [vmem:[%s3 + $0x68] sm:$0xf]
    %v2531 = vld [vmem:[%s3 + $0x6c] sm:$0xf]
    %v2532 = vld [vmem:[%s3 + $0x70] sm:$0xf]
    %v2533 = vld [vmem:[%s3 + $0x74] sm:$0xf]
    %v2534 = vld [vmem:[%s3 + $0x78] sm:$0xf]
    %v2535 = vld [vmem:[%s3 + $0x7c] sm:$0xf]
    %v2536 = vld [vmem:[%s4] sm:$0x1]
    %v2538 = vperm.slane %v2536, 0
    %v2572 = vunpack.c.l.b16 %v2504
    %v2573 = vunpack.c.l.b16 %v2505
    %v2574 = vunpack.c.l.b16 %v2506
    %v2575 = vunpack.c.l.b16 %v2507
    %v2576 = vunpack.c.l.b16 %v2508
    %v2577 = vunpack.c.l.b16 %v2509
    %v2578 = vunpack.c.l.b16 %v2510
    %v2579 = vunpack.c.l.b16 %v2511
    %v2580 = vunpack.c.l.b16 %v2512
    %v2581 = vunpack.c.l.b16 %v2513
    %v2582 = vunpack.c.l.b16 %v2514
    %v2583 = vunpack.c.l.b16 %v2515
    %v2584 = vunpack.c.l.b16 %v2516
    %v2585 = vunpack.c.l.b16 %v2517
    %v2586 = vunpack.c.l.b16 %v2518
    %v2587 = vunpack.c.l.b16 %v2519
    %v2588 = vunpack.c.l.b16 %v2520
    %v2589 = vunpack.c.l.b16 %v2521
    %v2590 = vunpack.c.l.b16 %v2522
    %v2591 = vunpack.c.l.b16 %v2523
    %v2592 = vunpack.c.l.b16 %v2524
    %v2593 = vunpack.c.l.b16 %v2525
    %v2594 = vunpack.c.l.b16 %v2526
    %v2595 = vunpack.c.l.b16 %v2527
    %v2596 = vunpack.c.l.b16 %v2528
    %v2597 = vunpack.c.l.b16 %v2529
    %v2598 = vunpack.c.l.b16 %v2530
    %v2599 = vunpack.c.l.b16 %v2531
    %v2600 = vunpack.c.l.b16 %v2532
    %v2601 = vunpack.c.l.b16 %v2533
    %v2602 = vunpack.c.l.b16 %v2534
    %v2603 = vunpack.c.l.b16 %v2535
    %v2604 = vpack.c.b16 %v2573, %v2572
    %v2605 = vpack.c.b16 %v2575, %v2574
    %v2606 = vpack.c.b16 %v2577, %v2576
    %v2607 = vpack.c.b16 %v2579, %v2578
    %v2608 = vpack.c.b16 %v2581, %v2580
    %v2609 = vpack.c.b16 %v2583, %v2582
    %v2610 = vpack.c.b16 %v2585, %v2584
    %v2611 = vpack.c.b16 %v2587, %v2586
    %v2612 = vpack.c.b16 %v2589, %v2588
    %v2613 = vpack.c.b16 %v2591, %v2590
    %v2614 = vpack.c.b16 %v2593, %v2592
    %v2615 = vpack.c.b16 %v2595, %v2594
    %v2616 = vpack.c.b16 %v2597, %v2596
    %v2617 = vpack.c.b16 %v2599, %v2598
    %v2618 = vpack.c.b16 %v2601, %v2600
    %v2619 = vpack.c.b16 %v2603, %v2602
    %2636 = vmatpush.bf16.msra.mxu0 %v2611
    %2637 = vmatpush.bf16.msra.mxu0 %v2610
    %2638 = vmatpush.bf16.msra.mxu0 %v2609
    %2639 = vmatpush.bf16.msra.mxu0 %v2608
    %2640 = vmatpush.bf16.msra.mxu0 %v2607
    %2641 = vmatpush.bf16.msra.mxu0 %v2606
    %2642 = vmatpush.bf16.msra.mxu0 %v2605
    %2643 = vmatpush.bf16.msra.mxu0 %v2604
    %2644 = vmatmul.bf16.gmra.mxu0 %v2502
    %v2645 = vpop.f32.mrf.mxu0
    %v2646 = vadd.f32 %v2538, %v2645
    %v2647 = vpop.f32.mrf.mxu0
    %2648 = vdwg.mxu0
    %2649 = vmatpush.bf16.msra.mxu0 %v2619
    %2650 = vmatpush.bf16.msra.mxu0 %v2618
    %2651 = vmatpush.bf16.msra.mxu0 %v2617
    %2652 = vmatpush.bf16.msra.mxu0 %v2616
    %2653 = vmatpush.bf16.msra.mxu0 %v2615
    %2654 = vmatpush.bf16.msra.mxu0 %v2614
    %2655 = vmatpush.bf16.msra.mxu0 %v2613
    %2656 = vmatpush.bf16.msra.mxu0 %v2612
    %2657 = vmatmul.bf16.gmra.mxu0 %v2503
    %v2658 = vpop.f32.mrf.mxu0
    %v2659 = vadd.f32 %v2646, %v2658
    %v2660 = vpop.f32.mrf.mxu0
    %2661 = vdwg.mxu0
    %2662 = vst [vmem:[#allocation6] sm:$0x3] %v2659
    // Predicated region
    $region26: #{attribute_forward.1} parent=1 // pred_check
      _
    $region27: #{attribute_forward.1} parent=1 // pred_check_branch
      %2664 = sbr.rel (0) target = $region29
    $region28: #{attribute_forward.1} parent=1 // pred_region
      %2666 = vsyncadd [#allocation4], 0
      %s2668 = sshll.u32 [#allocation5], 4
      %s2669 = int_to_ptr.vmem [resolvable:$true] %s2668
      %s2670 = sshll.u32 %s5, 4
      %s2671 = int_to_ptr.hbm [resolvable:$true] %s2670
      %2673 = dma.vmem_to_hbm [thread:$0]  %s2669, 64, %s2671, [#allocation4]
    $region29: #{attribute_forward.1} parent=1 // pred_fallthru
      _
    // Predicated region
    $region30: #{attribute_forward.1} parent=1 // pred_check
      _
    $region31: #{attribute_forward.1} parent=1 // pred_check_branch
      %2675 = sbr.rel (0) target = $region33
    $region32: #{attribute_forward.1} parent=1 // pred_region
      %2677 = vsyncadd [#allocation7], 0
      %s2679 = sshll.u32 [#allocation6], 4
      %s2680 = int_to_ptr.vmem [resolvable:$true] %s2679
      %s2681 = sshll.u32 %s6, 4
      %s2682 = int_to_ptr.hbm [resolvable:$true] %s2681
      %2684 = dma.vmem_to_hbm [thread:$0]  %s2680, 32, %s2682, [#allocation7]
    $region33: #{attribute_forward.1} parent=1 // pred_fallthru
      _
    // Predicated region
    $region34: #{attribute_forward.1} parent=1 // pred_check
      _
    $region35: #{attribute_forward.1} parent=1 // pred_check_branch
      %2686 = sbr.rel (0) target = $region37
    $region36: #{attribute_forward.1} parent=1 // pred_region
      %2688 = dma.done [#allocation4], 64
    $region37: #{attribute_forward.1} parent=1 // pred_fallthru
      _
    // Predicated region
    $region38: #{attribute_forward.1} parent=1 // pred_check
      _
    $region39: #{attribute_forward.1} parent=1 // pred_check_branch
      %2690 = sbr.rel (0) target = $region41
    $region40: #{attribute_forward.1} parent=1 // pred_region
      %2692 = dma.done [#allocation7], 32
    $region41: #{attribute_forward.1} parent=1 // pred_fallthru
      _
    %2693 = vsyncpa [#allocation3], 1
    %2694 = vsyncpa [#allocation4], 1
    %2695 = vsyncpa [#allocation7], 1

</llo_original>
